<compile_context>
chip_gen: v6e
topology: v6e:2x2x1
jax: 0.10.0
libtpu: 0.0.40
codegen_flags: <defaults>
</compile_context>

<pallas_src>
import jax
import jax.numpy as jnp
from jax.experimental import pallas as pl
from jax.experimental.pallas import tpu as pltpu

# ---------------- config (small synthetic sizes) ----------------
N_USERS = 31          # real users; +1 padding row -> 32 rows (sublane aligned)
N_ITEMS = 47          # real items; +1 padding row -> 48 rows
EMB = 32              # embedding_size
N_BEHAVIORS = 3
LAYERS = 2
REG_WEIGHT = 1e-4
LOG_REG = 0.5
BATCH = 8
N_NEGS = 2
MAX_LEN = 8           # max interacted items per user (padded item-set width)

# grid=(1,) toy path; at real sizes use ("parallel", ..., "arbitrary") so the
# independent row axis shards across v7x's two TensorCores.
_ARB1 = pltpu.CompilerParams(dimension_semantics=("arbitrary",))


def _full_spec(shape):
    nd = len(shape)
    return pl.BlockSpec(shape, lambda i, _nd=nd: (0,) * _nd)


def _pack_lanes4(x):
    """(4q, E) f32 value -> (q, 4E) lane-dense value (q must be 8-aligned)."""
    q = x.shape[0] // 4
    return jnp.concatenate([x[i * q:(i + 1) * q, :] for i in range(4)], axis=-1)


def _unpack_lanes4(y, e):
    """Wrapper-side (XLA) inverse of _pack_lanes4: (q, 4E) -> (4q, E)."""
    return jnp.concatenate([y[:, i * e:(i + 1) * e] for i in range(4)], axis=0)


# ---------- Pallas kernel 1: fused LightGCN (both graphs, all layers) ----------
def _lightgcn_fused_kernel(adj_all_ref, adj_buy_ref, emb_ref,
                           all_out_ref, buy_out_ref):
    # Global-graph propagation: E^(k+1) = A E^(k); output = mean_{k=0..L} E^(k)
    adj_all = adj_all_ref[...]                     # bf16 (Np, Np)
    cur_bf = emb_ref[...]                          # bf16 (Np, E)
    acc = cur_bf.astype(jnp.float32)               # f32 running sum
    for _ in range(LAYERS):                        # LAYERS=2: fully unrolled
        cur = jnp.dot(adj_all, cur_bf, preferred_element_type=jnp.float32)
        acc = acc + cur
        cur_bf = cur.astype(jnp.bfloat16)
    all_emb = acc * (1.0 / float(LAYERS + 1))      # f32 (Np, E)
    all_out_ref[...] = _pack_lanes4(all_emb)       # lane-dense unmasked store

    # Behavior(buy)-graph propagation on the already-propagated embeddings
    # (matches reference: behavior_Graph(global_Graph(E0))).
    adj_buy = adj_buy_ref[...]
    cur_bf = all_emb.astype(jnp.bfloat16)
    acc = all_emb
    for _ in range(LAYERS):
        cur = jnp.dot(adj_buy, cur_bf, preferred_element_type=jnp.float32)
        acc = acc + cur
        cur_bf = cur.astype(jnp.bfloat16)
    buy_out_ref[...] = _pack_lanes4(acc * (1.0 / float(LAYERS + 1)))


def lightgcn_fused(adj_all, adj_buy, emb):
    """One launch: returns (global_graph_emb, buy_graph_emb(global_graph_emb)).
    Toy-size path: whole graph fits in VMEM, grid=(1,).  At realistic sizes
    replace with a tiled kernel that keeps the (N, E) running embedding
    resident in VMEM scratch and streams bf16 adjacency tiles (see header)."""
    n, e = emb.shape
    n_pad = -(-n // 128) * 128                     # full-vreg rows (toy path)
    pad = n_pad - n
    adj_all_p = jnp.pad(adj_all, ((0, pad), (0, pad))).astype(jnp.bfloat16)
    adj_buy_p = jnp.pad(adj_buy, ((0, pad), (0, pad))).astype(jnp.bfloat16)
    emb_p = jnp.pad(emb, ((0, pad), (0, 0))).astype(jnp.bfloat16)
    q = n_pad // 4                                 # 8-aligned sublane chunks
    all_pk, buy_pk = pl.pallas_call(
        _lightgcn_fused_kernel,
        out_shape=(jax.ShapeDtypeStruct((q, 4 * e), jnp.float32),
                   jax.ShapeDtypeStruct((q, 4 * e), jnp.float32)),
        grid=(1,),
        in_specs=[_full_spec((n_pad, n_pad)), _full_spec((n_pad, n_pad)),
                  _full_spec((n_pad, e))],
        out_specs=(_full_spec((q, 4 * e)), _full_spec((q, 4 * e))),
        compiler_params=_ARB1,
    )(adj_all_p, adj_buy_p, emb_p)
    return _unpack_lanes4(all_pk, e)[:n], _unpack_lanes4(buy_pk, e)[:n]


# ---------- Pallas kernel 2: fused agg_info (gated aggregation) ----------
def _agg_info_kernel(ui_ref, bias_ref, w_ref, out_ref):
    """ui_ref: (Np, 2E) bf16 [u || i]; bias_ref: (Np, 3E) f32 [rb || zb || ub];
    w_ref: (2E, 3E) bf16 [Wr | Wz | Wu] with each column block K-stacked over
    the u/i inputs.  out_ref: (Np/4, 4E) lane-dense f32."""
    E = EMB
    ui = ui_ref[...]                                           # bf16 (Np, 2E)
    # 3 K-stacked matmuls (2E contraction) instead of 6 E-deep ones.
    r_pre = (jnp.dot(ui, w_ref[:, 0:E], preferred_element_type=jnp.float32)
             + bias_ref[:, 0:E])
    z_pre = (jnp.dot(ui, w_ref[:, E:2 * E], preferred_element_type=jnp.float32)
             + bias_ref[:, E:2 * E])
    r = jax.nn.sigmoid(r_pre)                                  # EUP, f32
    z = jax.nn.sigmoid(z_pre)                                  # EUP, f32
    u_f32 = ui[:, 0:E].astype(jnp.float32)
    ru = (r * u_f32).astype(jnp.bfloat16)
    rui = jnp.concatenate([ru, ui[:, E:2 * E]], axis=-1)       # (Np, 2E) bf16
    uh_pre = (jnp.dot(rui, w_ref[:, 2 * E:3 * E],
                      preferred_element_type=jnp.float32)
              + bias_ref[:, 2 * E:3 * E])
    u_final = z * jnp.tanh(uh_pre)                             # (Np, E) f32
    out_ref[...] = _pack_lanes4(u_final)                       # lane-dense store


def prepare_agg_weights(w_rz, w_u, bhv_embs):
    """One-time weight preprocessing (hoisted out of the kernel wrapper).
    PyTorch nn.Linear: y = x @ W.T with x = [u, i, bhv]."""
    E = EMB
    w_r = w_rz[:E]                                 # (E, 2E+B)  -> R half of RZ
    w_z = w_rz[E:]                                 # (E, 2E+B)  -> Z half of RZ
    # K-stacked [u; i] weights, one per gate: (2E, E)
    wr_ui = jnp.concatenate([w_r[:, :E].T, w_r[:, E:2 * E].T], axis=0)
    wz_ui = jnp.concatenate([w_z[:, :E].T, w_z[:, E:2 * E].T], axis=0)
    wu_ui = jnp.concatenate([w_u[:, :E].T, w_u[:, E:2 * E].T], axis=0)
    # single bf16 weight slab (2E, 3E) -> one DMA, static in-kernel slices
    w_slab = jnp.concatenate([wr_ui, wz_ui, wu_ui], axis=1).astype(jnp.bfloat16)
    # behavior projection: (n_bhv, B) @ (B, E) -> per-behavior bias rows.
    # For one-hot bhv_embs this is a row-gather of W.T, but stays correct if
    # bhv_embs is trained away from identity.  Packed as one (n_bhv, 3E) table.
    b_bias_all = jnp.concatenate([bhv_embs @ w_r[:, 2 * E:].T,
                                  bhv_embs @ w_z[:, 2 * E:].T,
                                  bhv_embs @ w_u[:, 2 * E:].T], axis=-1)
    return {"w_slab": w_slab, "b_bias_all": b_bias_all}


def agg_info_pallas(u_emb, i_emb, b_idx, aw):
    """u_emb, i_emb: (N, E) f32; b_idx: (N,) int behavior ids; aw: prepared
    weights.  Single launch for all rows; returns u_final (N, E) f32."""
    n, e = u_emb.shape
    pad = (-n) % 32                                 # 4 chunks x 8 sublanes
    if pad:
        u_emb = jnp.pad(u_emb, ((0, pad), (0, 0)))
        i_emb = jnp.pad(i_emb, ((0, pad), (0, 0)))
        b_idx = jnp.pad(b_idx, ((0, pad),))
    np_ = n + pad
    # TODO(synk): at scale, fuse these row gathers into the kernel via
    # PrefetchScalarGridSpec row-gather index_maps and a row-tiled grid; at
    # toy N a single-step kernel beats an N-step gathering grid.
    ui = jnp.concatenate([u_emb, i_emb], axis=-1).astype(jnp.bfloat16)  # (Np,2E)
    bias = aw["b_bias_all"][b_idx]                                       # (Np,3E)
    q = np_ // 4

    packed = pl.pallas_call(
        _agg_info_kernel,
        out_shape=jax.ShapeDtypeStruct((q, 4 * e), jnp.float32),
        grid=(1,),
        in_specs=[_full_spec((np_, 2 * e)),
                  _full_spec((np_, 3 * e)),
                  _full_spec((2 * e, 3 * e))],
        out_specs=_full_spec((q, 4 * e)),
        compiler_params=_ARB1,
    )(ui, bias, aw["w_slab"])
    return _unpack_lanes4(packed, e)[:n]


# ---------------- graph construction ----------------
def build_norm_adj(inter):
    """inter: (Nu, Ni) binary user-item matrix -> symmetric normalized adjacency."""
    Nu, Ni = inter.shape
    n = Nu + Ni
    A = jnp.zeros((n, n), jnp.float32)
    A = A.at[:Nu, Nu:].set(inter)
    A = A.at[Nu:, :Nu].set(inter.T)
    deg = jnp.sum(A, axis=1)
    d_inv_sqrt = jnp.where(deg > 0, 1.0 / jnp.sqrt(jnp.maximum(deg, 1e-12)), 0.0)
    return A * d_inv_sqrt[:, None] * d_inv_sqrt[None, :]


# ---------------- parameter init (deterministic, mirrors _init_weights) ----------------
def init_params(key):
    ks = jax.random.split(key, 4)

    def xavier_uniform(k, shape):
        limit = (6.0 / (shape[0] + shape[1])) ** 0.5
        return jax.random.uniform(k, shape, jnp.float32, -limit, limit)

    def xavier_normal(k, shape):
        std = (2.0 / (shape[0] + shape[1])) ** 0.5
        return std * jax.random.normal(k, shape, jnp.float32)

    return {
        "user_embedding": xavier_uniform(ks[0], (N_USERS + 1, EMB)),
        "item_embedding": xavier_uniform(ks[1], (N_ITEMS + 1, EMB)),
        "bhv_embs": jnp.eye(N_BEHAVIORS, dtype=jnp.float32),
        "W_RZ": xavier_normal(ks[2], (2 * EMB, 2 * EMB + N_BEHAVIORS)),
        "W_U": xavier_normal(ks[3], (EMB, 2 * EMB + N_BEHAVIORS)),
    }


# ---------------- BIPN forward ----------------
def bipn_forward(params, batch_data, ui_padded, ui_degree, adj_all, adj_buy):
    user_w = params["user_embedding"]
    item_w = params["item_embedding"]
    aw = prepare_agg_weights(params["W_RZ"], params["W_U"], params["bhv_embs"])

    # ---- LightGCN propagation: single fused Pallas launch for both graphs ----
    all_emb0 = jnp.concatenate([user_w, item_w], axis=0)
    all_emb, buy_emb = lightgcn_fused(adj_all, adj_buy, all_emb0)
    user_embedding = all_emb[:N_USERS + 1]
    item_embedding = all_emb[N_USERS + 1:]
    user_buy_embedding = buy_emb[:N_USERS + 1]
    item_buy_embedding = buy_emb[N_USERS + 1:]

    # ---- gather inputs for BOTH agg_info uses, run one fused kernel ----
    # (a) log-loss (BCE) branch rows
    p_samples = batch_data[:, 0, :]
    n_samples = batch_data[:, 1:-1, :].reshape(-1, 4)
    samples = jnp.concatenate([p_samples, n_samples], axis=0)          # (Nlog, 4)
    u_s, i_s, b_s = samples[:, 0], samples[:, 1], samples[:, 2]
    gt = samples[:, 3:4].astype(jnp.float32)                           # (Nlog, 1)
    u_emb_log = user_embedding[u_s]
    i_emb_log = item_embedding[i_s]
    n_log = u_emb_log.shape[0]

    # (b) BPR branch rows (user_agg_item over each user's interacted items)
    # TODO(synk): dynamic boolean filtering `pair_samples[mask]` has no
    # static-shape Pallas/JAX equivalent; implemented as a masked mean instead.
    pair_samples = batch_data[:, -1, :-1]                              # (batch, 3)
    valid = jnp.any(pair_samples != 0, axis=-1).astype(jnp.float32)    # (batch,)
    user_samples = pair_samples[:, 0]
    item_samples = pair_samples[:, 1:]                                 # (batch, 2)
    u_emb_p = user_embedding[user_samples][:, None, :]                 # (batch,1,E)
    i_emb_p = item_embedding[item_samples]                             # (batch,2,E)

    padded = ui_padded[user_samples]                                   # (batch, MAX_LEN)
    degree = ui_degree[user_samples][:, None].astype(jnp.float32)      # (batch, 1)
    item_mask = padded == 0
    agg_item_emb = item_embedding[padded]                              # (batch, MAX_LEN, E)
    bsz = padded.shape[0]
    u_in = jnp.broadcast_to(u_emb_p, (bsz, MAX_LEN, EMB))

    # merged kernel call: [log rows ; BPR rows]
    u_all = jnp.concatenate([u_emb_log, u_in.reshape(-1, EMB)], axis=0)
    i_all = jnp.concatenate([i_emb_log, agg_item_emb.reshape(-1, EMB)], axis=0)
    b_all = jnp.concatenate(
        [b_s.astype(jnp.int32),
         jnp.full((bsz * MAX_LEN,), N_BEHAVIORS - 1, jnp.int32)], axis=0)
    u_final_all = agg_info_pallas(u_all, i_all, b_all, aw)             # (Ntot, E)

    # ---- log-loss branch (score reduction done in JAX: lane-sparse (N,1)
    #      output kept out of the kernel) ----
    u_final_log = u_final_all[:n_log]
    log_scores = jnp.sum(u_final_log * i_emb_log, axis=-1, keepdims=True)
    p = jax.nn.sigmoid(log_scores)
    log_p = jnp.maximum(jnp.log(p), -100.0)            # BCELoss log clamp
    log_1mp = jnp.maximum(jnp.log(1.0 - p), -100.0)
    log_loss = -jnp.mean(gt * log_p + (1.0 - gt) * log_1mp)

    # ---- BPR branch ----
    uf = u_final_all[n_log:].reshape(bsz, MAX_LEN, EMB)
    uf = jnp.where(item_mask[..., None], 0.0, uf)
    u_point = jnp.sum(uf, axis=1)[:, None, :]                          # (batch,1,E)
    lamb = 1.0 / (degree + 1e-8)                                       # (batch,1)

    u_gen = u_emb_p + user_buy_embedding[user_samples][:, None, :]
    i_final = i_emb_p + item_buy_embedding[item_samples]
    score_point = jnp.sum(u_point * i_emb_p, axis=-1)                  # (batch,2)
    score_gen = jnp.sum(u_gen * i_final, axis=-1)                      # (batch,2)
    bpr_scores = (1.0 - lamb) * score_point + lamb * score_gen         # (batch,2)
    p_sc, n_sc = bpr_scores[:, 0], bpr_scores[:, 1]
    per_row = -jnp.log(1e-10 + jax.nn.sigmoid(p_sc - n_sc))
    bpr_loss = jnp.sum(per_row * valid) / jnp.maximum(jnp.sum(valid), 1.0)

    # EmbLoss (RecBole-style): sum of L2 (Frobenius) norms / n_rows of last emb
    # TODO(synk): verify against the reference EmbLoss normalization.
    emb_loss = (jnp.linalg.norm(user_w) + jnp.linalg.norm(item_w)) / item_w.shape[0]

    return LOG_REG * log_loss + (1.0 - LOG_REG) * bpr_loss + REG_WEIGHT * emb_loss


if __name__ == "__main__":
    key = jax.random.PRNGKey(0)
    kp, kg, ki, kb = jax.random.split(key, 4)
    params = init_params(kp)

    # interaction matrices for the two LightGCN graphs (row/col 0 = padding)
    kg1, kg2 = jax.random.split(kg)
    inter_all = (jax.random.uniform(kg1, (N_USERS + 1, N_ITEMS + 1)) < 0.15).astype(jnp.float32)
    inter_buy = inter_all * (jax.random.uniform(kg2, (N_USERS + 1, N_ITEMS + 1)) < 0.5)
    inter_all = inter_all.at[0, :].set(0.0).at[:, 0].set(0.0)
    inter_buy = inter_buy.at[0, :].set(0.0).at[:, 0].set(0.0)
    adj_all = build_norm_adj(inter_all)
    adj_buy = build_norm_adj(inter_buy)

    # per-user interacted item sets (last behavior), zero-padded
    ki1, ki2 = jax.random.split(ki)
    ui_items = jax.random.randint(ki1, (N_USERS + 1, MAX_LEN), 1, N_ITEMS + 1)
    ui_lens = jax.random.randint(ki2, (N_USERS + 1,), 1, MAX_LEN + 1)
    pos_idx = jnp.arange(MAX_LEN)[None, :]
    ui_padded = jnp.where(pos_idx < ui_lens[:, None], ui_items, 0).astype(jnp.int32)
    ui_degree = jnp.sum((ui_padded != 0).astype(jnp.int32), axis=1)

    # batch_data: (BATCH, 1 pos + N_NEGS negs + 1 pair-row, 4)
    kb1, kb2, kb3, kb4, kb5, kb6 = jax.random.split(kb, 6)
    log_users = jax.random.randint(kb1, (BATCH, 1 + N_NEGS, 1), 1, N_USERS + 1)
    log_items = jax.random.randint(kb2, (BATCH, 1 + N_NEGS, 1), 1, N_ITEMS + 1)
    log_bhvs = jax.random.randint(kb3, (BATCH, 1 + N_NEGS, 1), 0, N_BEHAVIORS)
    log_gts = jnp.concatenate([jnp.ones((BATCH, 1, 1), jnp.int32),
                               jnp.zeros((BATCH, N_NEGS, 1), jnp.int32)], axis=1)
    log_rows = jnp.concatenate([log_users, log_items, log_bhvs, log_gts], axis=-1)

    pair_users = jax.random.randint(kb4, (BATCH, 1, 1), 1, N_USERS + 1)
    pair_pos = jax.random.randint(kb5, (BATCH, 1, 1), 1, N_ITEMS + 1)
    pair_neg = jax.random.randint(kb6, (BATCH, 1, 1), 1, N_ITEMS + 1)
    pair_row = jnp.concatenate([pair_users, pair_pos, pair_neg,
                                jnp.zeros((BATCH, 1, 1), jnp.int32)], axis=-1)
    batch_data = jnp.concatenate([log_rows, pair_row], axis=1).astype(jnp.int32)

    loss = jax.jit(bipn_forward)(params, batch_data, ui_padded, ui_degree, adj_all, adj_buy)
    loss = jax.block_until_ready(loss)
    assert loss.shape == () and bool(jnp.isfinite(loss))
    print("KERNEL_OK")
</pallas_src>

<mosaic_0001>
module attributes {stable_mosaic.version = 11 : i64} {
  func.func @_lightgcn_fused_kernel(%arg0: i32, %arg1: memref<128x128xbf16, #tpu.memory_space<vmem>>, %arg2: memref<128x128xbf16, #tpu.memory_space<vmem>>, %arg3: memref<128x32xbf16, #tpu.memory_space<vmem>>, %arg4: memref<32x128xf32, #tpu.memory_space<vmem>>, %arg5: memref<32x128xf32, #tpu.memory_space<vmem>>) attributes {dimension_semantics = [#tpu.dimension_semantics<arbitrary>], iteration_bounds = array<i64: 1>, scalar_prefetch = 0 : i64, scratch_operands = 0 : i64, tpu.core_type = #tpu.core_type<tc>, window_params = [{pipeline_mode = #tpu.pipeline_mode<synchronous>, transform_indices = @transform_0, window_bounds = array<i64: 128, 128>}, {pipeline_mode = #tpu.pipeline_mode<synchronous>, transform_indices = @transform_1, window_bounds = array<i64: 128, 128>}, {pipeline_mode = #tpu.pipeline_mode<synchronous>, transform_indices = @transform_2, window_bounds = array<i64: 128, 32>}, {pipeline_mode = #tpu.pipeline_mode<synchronous>, transform_indices = @transform_3, window_bounds = array<i64: 32, 128>}, {pipeline_mode = #tpu.pipeline_mode<synchronous>, transform_indices = @transform_4, window_bounds = array<i64: 32, 128>}]} {
    %c0 = arith.constant 0 : index
    %c0_0 = arith.constant 0 : index
    %0 = vector.load %arg1[%c0, %c0_0] : memref<128x128xbf16, #tpu.memory_space<vmem>>, vector<128x128xbf16>
    %c0_1 = arith.constant 0 : index
    %c0_2 = arith.constant 0 : index
    %1 = vector.load %arg3[%c0_1, %c0_2] : memref<128x32xbf16, #tpu.memory_space<vmem>>, vector<128x32xbf16>
    %2 = arith.extf %1 : vector<128x32xbf16> to vector<128x32xf32>
    %cst = arith.constant dense<0.000000e+00> : vector<128x32xf32>
    %3 = tpu.matmul %0, %1, %cst {dimension_numbers = #tpu.dot_dimension_numbers<[1], [0], [0], [1], [0, 0, 1, 1], [], []>} : vector<128x128xbf16>, vector<128x32xbf16>, vector<128x32xf32> -> vector<128x32xf32>
    %4 = arith.addf %2, %3 : vector<128x32xf32>
    %5 = arith.truncf %3 : vector<128x32xf32> to vector<128x32xbf16>
    %cst_3 = arith.constant dense<0.000000e+00> : vector<128x32xf32>
    %6 = tpu.matmul %0, %5, %cst_3 {dimension_numbers = #tpu.dot_dimension_numbers<[1], [0], [0], [1], [0, 0, 1, 1], [], []>} : vector<128x128xbf16>, vector<128x32xbf16>, vector<128x32xf32> -> vector<128x32xf32>
    %7 = arith.addf %4, %6 : vector<128x32xf32>
    %cst_4 = arith.constant 0.333333343 : f32
    %8 = vector.broadcast %cst_4 : f32 to vector<128x32xf32>
    %9 = arith.mulf %7, %8 : vector<128x32xf32>
    %10 = vector.extract_strided_slice %9 {offsets = [0, 0], sizes = [32, 32], strides = [1, 1]} : vector<128x32xf32> to vector<32x32xf32>
    %11 = vector.extract_strided_slice %9 {offsets = [32, 0], sizes = [32, 32], strides = [1, 1]} : vector<128x32xf32> to vector<32x32xf32>
    %12 = vector.extract_strided_slice %9 {offsets = [64, 0], sizes = [32, 32], strides = [1, 1]} : vector<128x32xf32> to vector<32x32xf32>
    %13 = vector.extract_strided_slice %9 {offsets = [96, 0], sizes = [32, 32], strides = [1, 1]} : vector<128x32xf32> to vector<32x32xf32>
    %14 = tpu.concatenate %10, %11, %12, %13 in 1 : vector<32x32xf32>, vector<32x32xf32>, vector<32x32xf32>, vector<32x32xf32> -> vector<32x128xf32>
    %c0_5 = arith.constant 0 : index
    %c0_6 = arith.constant 0 : index
    %15 = vector.load %arg4[%c0_5, %c0_6] : memref<32x128xf32, #tpu.memory_space<vmem>>, vector<32x128xf32>
    tpu.vector_store %arg4[%c0_5, %c0_6], %14 {strides = array<i32>} : memref<32x128xf32, #tpu.memory_space<vmem>>, vector<32x128xf32>,
    %c0_7 = arith.constant 0 : index
    %c0_8 = arith.constant 0 : index
    %16 = vector.load %arg2[%c0_7, %c0_8] : memref<128x128xbf16, #tpu.memory_space<vmem>>, vector<128x128xbf16>
    %17 = arith.truncf %9 : vector<128x32xf32> to vector<128x32xbf16>
    %cst_9 = arith.constant dense<0.000000e+00> : vector<128x32xf32>
    %18 = tpu.matmul %16, %17, %cst_9 {dimension_numbers = #tpu.dot_dimension_numbers<[1], [0], [0], [1], [0, 0, 1, 1], [], []>} : vector<128x128xbf16>, vector<128x32xbf16>, vector<128x32xf32> -> vector<128x32xf32>
    %19 = arith.addf %9, %18 : vector<128x32xf32>
    %20 = arith.truncf %18 : vector<128x32xf32> to vector<128x32xbf16>
    %cst_10 = arith.constant dense<0.000000e+00> : vector<128x32xf32>
    %21 = tpu.matmul %16, %20, %cst_10 {dimension_numbers = #tpu.dot_dimension_numbers<[1], [0], [0], [1], [0, 0, 1, 1], [], []>} : vector<128x128xbf16>, vector<128x32xbf16>, vector<128x32xf32> -> vector<128x32xf32>
    %22 = arith.addf %19, %21 : vector<128x32xf32>
    %cst_11 = arith.constant 0.333333343 : f32
    %23 = vector.broadcast %cst_11 : f32 to vector<128x32xf32>
    %24 = arith.mulf %22, %23 : vector<128x32xf32>
    %25 = vector.extract_strided_slice %24 {offsets = [0, 0], sizes = [32, 32], strides = [1, 1]} : vector<128x32xf32> to vector<32x32xf32>
    %26 = vector.extract_strided_slice %24 {offsets = [32, 0], sizes = [32, 32], strides = [1, 1]} : vector<128x32xf32> to vector<32x32xf32>
    %27 = vector.extract_strided_slice %24 {offsets = [64, 0], sizes = [32, 32], strides = [1, 1]} : vector<128x32xf32> to vector<32x32xf32>
    %28 = vector.extract_strided_slice %24 {offsets = [96, 0], sizes = [32, 32], strides = [1, 1]} : vector<128x32xf32> to vector<32x32xf32>
    %29 = tpu.concatenate %25, %26, %27, %28 in 1 : vector<32x32xf32>, vector<32x32xf32>, vector<32x32xf32>, vector<32x32xf32> -> vector<32x128xf32>
    %c0_12 = arith.constant 0 : index
    %c0_13 = arith.constant 0 : index
    %30 = vector.load %arg5[%c0_12, %c0_13] : memref<32x128xf32, #tpu.memory_space<vmem>>, vector<32x128xf32>
    tpu.vector_store %arg5[%c0_12, %c0_13], %29 {strides = array<i32>} : memref<32x128xf32, #tpu.memory_space<vmem>>, vector<32x128xf32>,
    return
  }
  func.func @transform_0(%arg0: i32) -> (i32, i32) {
    %c0_i32 = arith.constant 0 : i32
    %c0_i32_0 = arith.constant 0 : i32
    %c0_i32_1 = arith.constant 0 : i32
    return %c0_i32, %c0_i32_0 : i32, i32
  }
  func.func @transform_1(%arg0: i32) -> (i32, i32) {
    %c0_i32 = arith.constant 0 : i32
    %c0_i32_0 = arith.constant 0 : i32
    %c0_i32_1 = arith.constant 0 : i32
    return %c0_i32, %c0_i32_0 : i32, i32
  }
  func.func @transform_2(%arg0: i32) -> (i32, i32) {
    %c0_i32 = arith.constant 0 : i32
    %c0_i32_0 = arith.constant 0 : i32
    %c0_i32_1 = arith.constant 0 : i32
    return %c0_i32, %c0_i32_0 : i32, i32
  }
  func.func @transform_3(%arg0: i32) -> (i32, i32) {
    %c0_i32 = arith.constant 0 : i32
    %c0_i32_0 = arith.constant 0 : i32
    %c0_i32_1 = arith.constant 0 : i32
    return %c0_i32, %c0_i32_0 : i32, i32
  }
  func.func @transform_4(%arg0: i32) -> (i32, i32) {
    %c0_i32 = arith.constant 0 : i32
    %c0_i32_0 = arith.constant 0 : i32
    %c0_i32_1 = arith.constant 0 : i32
    return %c0_i32, %c0_i32_0 : i32, i32
  }
}

module attributes {stable_mosaic.version = 11 : i64} {
  func.func @_agg_info_kernel(%arg0: i32, %arg1: memref<96x64xbf16, #tpu.memory_space<vmem>>, %arg2: memref<96x96xf32, #tpu.memory_space<vmem>>, %arg3: memref<64x96xbf16, #tpu.memory_space<vmem>>, %arg4: memref<24x128xf32, #tpu.memory_space<vmem>>) attributes {dimension_semantics = [#tpu.dimension_semantics<arbitrary>], iteration_bounds = array<i64: 1>, scalar_prefetch = 0 : i64, scratch_operands = 0 : i64, tpu.core_type = #tpu.core_type<tc>, window_params = [{pipeline_mode = #tpu.pipeline_mode<synchronous>, transform_indices = @transform_0, window_bounds = array<i64: 96, 64>}, {pipeline_mode = #tpu.pipeline_mode<synchronous>, transform_indices = @transform_1, window_bounds = array<i64: 96, 96>}, {pipeline_mode = #tpu.pipeline_mode<synchronous>, transform_indices = @transform_2, window_bounds = array<i64: 64, 96>}, {pipeline_mode = #tpu.pipeline_mode<synchronous>, transform_indices = @transform_3, window_bounds = array<i64: 24, 128>}]} {
    %c0 = arith.constant 0 : index
    %c0_0 = arith.constant 0 : index
    %0 = vector.load %arg1[%c0, %c0_0] : memref<96x64xbf16, #tpu.memory_space<vmem>>, vector<96x64xbf16>
    %c0_1 = arith.constant 0 : index
    %c0_2 = arith.constant 0 : index
    %1 = vector.load %arg3[%c0_1, %c0_2] : memref<64x96xbf16, #tpu.memory_space<vmem>>, vector<64x32xbf16>
    %cst = arith.constant dense<0.000000e+00> : vector<96x32xf32>
    %2 = tpu.matmul %0, %1, %cst {dimension_numbers = #tpu.dot_dimension_numbers<[1], [0], [0], [1], [0, 0, 1, 1], [], []>} : vector<96x64xbf16>, vector<64x32xbf16>, vector<96x32xf32> -> vector<96x32xf32>
    %c0_3 = arith.constant 0 : index
    %c0_4 = arith.constant 0 : index
    %3 = vector.load %arg2[%c0_3, %c0_4] : memref<96x96xf32, #tpu.memory_space<vmem>>, vector<96x32xf32>
    %4 = arith.addf %2, %3 : vector<96x32xf32>
    %c0_5 = arith.constant 0 : index
    %c32 = arith.constant 32 : index
    %5 = vector.load %arg3[%c0_5, %c32] : memref<64x96xbf16, #tpu.memory_space<vmem>>, vector<64x32xbf16>
    %cst_6 = arith.constant dense<0.000000e+00> : vector<96x32xf32>
    %6 = tpu.matmul %0, %5, %cst_6 {dimension_numbers = #tpu.dot_dimension_numbers<[1], [0], [0], [1], [0, 0, 1, 1], [], []>} : vector<96x64xbf16>, vector<64x32xbf16>, vector<96x32xf32> -> vector<96x32xf32>
    %c0_7 = arith.constant 0 : index
    %c32_8 = arith.constant 32 : index
    %7 = vector.load %arg2[%c0_7, %c32_8] : memref<96x96xf32, #tpu.memory_space<vmem>>, vector<96x32xf32>
    %8 = arith.addf %6, %7 : vector<96x32xf32>
    %9 = arith.negf %4 : vector<96x32xf32>
    %10 = math.exp %9 : vector<96x32xf32>
    %cst_9 = arith.constant 1.000000e+00 : f32
    %11 = vector.broadcast %cst_9 : f32 to vector<96x32xf32>
    %12 = arith.addf %11, %10 : vector<96x32xf32>
    %13 = arith.divf %11, %12 : vector<96x32xf32>
    %14 = arith.negf %8 : vector<96x32xf32>
    %15 = math.exp %14 : vector<96x32xf32>
    %cst_10 = arith.constant 1.000000e+00 : f32
    %16 = vector.broadcast %cst_10 : f32 to vector<96x32xf32>
    %17 = arith.addf %16, %15 : vector<96x32xf32>
    %18 = arith.divf %16, %17 : vector<96x32xf32>
    %19 = vector.extract_strided_slice %0 {offsets = [0, 0], sizes = [96, 32], strides = [1, 1]} : vector<96x64xbf16> to vector<96x32xbf16>
    %20 = arith.extf %19 : vector<96x32xbf16> to vector<96x32xf32>
    %21 = arith.mulf %13, %20 : vector<96x32xf32>
    %22 = arith.truncf %21 : vector<96x32xf32> to vector<96x32xbf16>
    %23 = vector.extract_strided_slice %0 {offsets = [0, 32], sizes = [96, 32], strides = [1, 1]} : vector<96x64xbf16> to vector<96x32xbf16>
    %24 = tpu.concatenate %22, %23 in 1 : vector<96x32xbf16>, vector<96x32xbf16> -> vector<96x64xbf16>
    %c0_11 = arith.constant 0 : index
    %c64 = arith.constant 64 : index
    %25 = vector.load %arg3[%c0_11, %c64] : memref<64x96xbf16, #tpu.memory_space<vmem>>, vector<64x32xbf16>
    %cst_12 = arith.constant dense<0.000000e+00> : vector<96x32xf32>
    %26 = tpu.matmul %24, %25, %cst_12 {dimension_numbers = #tpu.dot_dimension_numbers<[1], [0], [0], [1], [0, 0, 1, 1], [], []>} : vector<96x64xbf16>, vector<64x32xbf16>, vector<96x32xf32> -> vector<96x32xf32>
    %c0_13 = arith.constant 0 : index
    %c64_14 = arith.constant 64 : index
    %27 = vector.load %arg2[%c0_13, %c64_14] : memref<96x96xf32, #tpu.memory_space<vmem>>, vector<96x32xf32>
    %28 = arith.addf %26, %27 : vector<96x32xf32>
    %29 = math.tanh %28 : vector<96x32xf32>
    %30 = arith.mulf %18, %29 : vector<96x32xf32>
    %31 = vector.extract_strided_slice %30 {offsets = [0, 0], sizes = [24, 32], strides = [1, 1]} : vector<96x32xf32> to vector<24x32xf32>
    %32 = vector.extract_strided_slice %30 {offsets = [24, 0], sizes = [24, 32], strides = [1, 1]} : vector<96x32xf32> to vector<24x32xf32>
    %33 = vector.extract_strided_slice %30 {offsets = [48, 0], sizes = [24, 32], strides = [1, 1]} : vector<96x32xf32> to vector<24x32xf32>
    %34 = vector.extract_strided_slice %30 {offsets = [72, 0], sizes = [24, 32], strides = [1, 1]} : vector<96x32xf32> to vector<24x32xf32>
    %35 = tpu.concatenate %31, %32, %33, %34 in 1 : vector<24x32xf32>, vector<24x32xf32>, vector<24x32xf32>, vector<24x32xf32> -> vector<24x128xf32>
    %c0_15 = arith.constant 0 : index
    %c0_16 = arith.constant 0 : index
    %36 = vector.load %arg4[%c0_15, %c0_16] : memref<24x128xf32, #tpu.memory_space<vmem>>, vector<24x128xf32>
    tpu.vector_store %arg4[%c0_15, %c0_16], %35 {strides = array<i32>} : memref<24x128xf32, #tpu.memory_space<vmem>>, vector<24x128xf32>,
    return
  }
  func.func @transform_0(%arg0: i32) -> (i32, i32) {
    %c0_i32 = arith.constant 0 : i32
    %c0_i32_0 = arith.constant 0 : i32
    %c0_i32_1 = arith.constant 0 : i32
    return %c0_i32, %c0_i32_0 : i32, i32
  }
  func.func @transform_1(%arg0: i32) -> (i32, i32) {
    %c0_i32 = arith.constant 0 : i32
    %c0_i32_0 = arith.constant 0 : i32
    %c0_i32_1 = arith.constant 0 : i32
    return %c0_i32, %c0_i32_0 : i32, i32
  }
  func.func @transform_2(%arg0: i32) -> (i32, i32) {
    %c0_i32 = arith.constant 0 : i32
    %c0_i32_0 = arith.constant 0 : i32
    %c0_i32_1 = arith.constant 0 : i32
    return %c0_i32, %c0_i32_0 : i32, i32
  }
  func.func @transform_3(%arg0: i32) -> (i32, i32) {
    %c0_i32 = arith.constant 0 : i32
    %c0_i32_0 = arith.constant 0 : i32
    %c0_i32_1 = arith.constant 0 : i32
    return %c0_i32, %c0_i32_0 : i32, i32
  }
}

</mosaic_0001>

<llo_original>
// kernel: bipn_forward.2
$region0: #{bipn_forward.2}
  #allocation0 [shape = 'u32[]', space=smem, size = 0x4, offset = 0x4, fixed_abs, tag = 'smem constant byte address 0x4 - core index']
  #allocation1 [shape = 'u32[144,128]{1,0:T(1,128)}', space=vmem, size = 0x12000, scoped, tag = 'internal scratch']
  %s0 = inlined_call_operand.vmem [shape: bf16[128,128], index: 0, kind: input, shape index: {}]
  %s1 = inlined_call_operand.vmem [shape: bf16[128,128], index: 1, kind: input, shape index: {}]
  %s2 = inlined_call_operand.vmem [shape: bf16[128,32], index: 2, kind: input, shape index: {}]
  %s3 = inlined_call_operand.vmem [shape: f32[32,128], index: 3, kind: output, shape index: {0}]
  %s4 = inlined_call_operand.vmem [shape: f32[32,128], index: 4, kind: output, shape index: {1}]
  %5 = xla_tuple %s3, %s4
  %s6 = sld [smem:[#allocation0]]
  $region30: #{bipn_forward.2} parent=0
    _
  %s8 = ssub.s32 1, %s6
  %s9 = scalar_select 0, %s8, %s6
  // Predicated region
  $region2: #{bipn_forward.2} parent=0 // pred_check
    _
  $region3: #{bipn_forward.2} parent=0 // pred_check_branch
    %11 = sbr.rel (0) target = $region5
  $region4: #{bipn_forward.2} parent=0 // pred_region
    _
  $region5: #{bipn_forward.2} parent=0 // pred_fallthru
    _
  // Predicated region
  $region6: #{bipn_forward.2} parent=0 // pred_check
    _
  $region7: #{bipn_forward.2} parent=0 // pred_check_branch
    %13 = sbr.rel (0) target = $region9
  $region8: #{bipn_forward.2} parent=0 // pred_region
    _
  $region9: #{bipn_forward.2} parent=0 // pred_fallthru
    _
  // Predicated region
  $region10: #{bipn_forward.2} parent=0 // pred_check
    _
  $region11: #{bipn_forward.2} parent=0 // pred_check_branch
    %15 = sbr.rel (0) target = $region13
  $region12: #{bipn_forward.2} parent=0 // pred_region
    _
  $region13: #{bipn_forward.2} parent=0 // pred_fallthru
    _
  %v17 = vld [vmem:[%s0] sm:$0xf]
  %v18 = vld [vmem:[%s0 + $0x4] sm:$0xf]
  %v19 = vld [vmem:[%s0 + $0x8] sm:$0xf]
  %v20 = vld [vmem:[%s0 + $0xc] sm:$0xf]
  %v21 = vld [vmem:[%s0 + $0x10] sm:$0xf]
  %v22 = vld [vmem:[%s0 + $0x14] sm:$0xf]
  %v23 = vld [vmem:[%s0 + $0x18] sm:$0xf]
  %v24 = vld [vmem:[%s0 + $0x1c] sm:$0xf]
  %v25 = vld [vmem:[%s0 + $0x20] sm:$0xf]
  %v26 = vld [vmem:[%s0 + $0x24] sm:$0xf]
  %v27 = vld [vmem:[%s0 + $0x28] sm:$0xf]
  %v28 = vld [vmem:[%s0 + $0x2c] sm:$0xf]
  %v29 = vld [vmem:[%s0 + $0x30] sm:$0xf]
  %v30 = vld [vmem:[%s0 + $0x34] sm:$0xf]
  %v31 = vld [vmem:[%s0 + $0x38] sm:$0xf]
  %v32 = vld [vmem:[%s0 + $0x3c] sm:$0xf]
  %v33 = vld [vmem:[%s2] sm:$0xf]
  %v34 = vld [vmem:[%s2 + $0x4] sm:$0xf]
  %v35 = vld [vmem:[%s2 + $0x8] sm:$0xf]
  %v36 = vld [vmem:[%s2 + $0xc] sm:$0xf]
  %v37 = vld [vmem:[%s2 + $0x10] sm:$0xf]
  %v38 = vld [vmem:[%s2 + $0x14] sm:$0xf]
  %v39 = vld [vmem:[%s2 + $0x18] sm:$0xf]
  %v40 = vld [vmem:[%s2 + $0x1c] sm:$0xf]
  %v41 = vld [vmem:[%s2 + $0x20] sm:$0xf]
  %v42 = vld [vmem:[%s2 + $0x24] sm:$0xf]
  %v43 = vld [vmem:[%s2 + $0x28] sm:$0xf]
  %v44 = vld [vmem:[%s2 + $0x2c] sm:$0xf]
  %v45 = vld [vmem:[%s2 + $0x30] sm:$0xf]
  %v46 = vld [vmem:[%s2 + $0x34] sm:$0xf]
  %v47 = vld [vmem:[%s2 + $0x38] sm:$0xf]
  %v48 = vld [vmem:[%s2 + $0x3c] sm:$0xf]
  %v49 = vunpack.c.l.bf16 %v33
  %v50 = vunpack.c.l.bf16 %v34
  %v51 = vunpack.c.l.bf16 %v35
  %v52 = vunpack.c.l.bf16 %v36
  %v53 = vunpack.c.l.bf16 %v37
  %v54 = vunpack.c.l.bf16 %v38
  %v55 = vunpack.c.l.bf16 %v39
  %v56 = vunpack.c.l.bf16 %v40
  %v57 = vunpack.c.l.bf16 %v41
  %v58 = vunpack.c.l.bf16 %v42
  %v59 = vunpack.c.l.bf16 %v43
  %v60 = vunpack.c.l.bf16 %v44
  %v61 = vunpack.c.l.bf16 %v45
  %v62 = vunpack.c.l.bf16 %v46
  %v63 = vunpack.c.l.bf16 %v47
  %v64 = vunpack.c.l.bf16 %v48
  %v81 = vunpack.c.l.b16 %v17
  %v82 = vunpack.c.l.b16 %v18
  %v83 = vunpack.c.l.b16 %v19
  %v84 = vunpack.c.l.b16 %v20
  %v85 = vunpack.c.l.b16 %v21
  %v86 = vunpack.c.l.b16 %v22
  %v87 = vunpack.c.l.b16 %v23
  %v88 = vunpack.c.l.b16 %v24
  %v89 = vunpack.c.l.b16 %v25
  %v90 = vunpack.c.l.b16 %v26
  %v91 = vunpack.c.l.b16 %v27
  %v92 = vunpack.c.l.b16 %v28
  %v93 = vunpack.c.l.b16 %v29
  %v94 = vunpack.c.l.b16 %v30
  %v95 = vunpack.c.l.b16 %v31
  %v96 = vunpack.c.l.b16 %v32
  %v97 = vpack.c.b16 %v82, %v81
  %v98 = vpack.c.b16 %v84, %v83
  %v99 = vpack.c.b16 %v86, %v85
  %v100 = vpack.c.b16 %v88, %v87
  %v101 = vpack.c.b16 %v90, %v89
  %v102 = vpack.c.b16 %v92, %v91
  %v103 = vpack.c.b16 %v94, %v93
  %v104 = vpack.c.b16 %v96, %v95
  %v129 = vunpack.c.l.b16 %v33
  %v130 = vunpack.c.l.b16 %v34
  %v131 = vunpack.c.l.b16 %v35
  %v132 = vunpack.c.l.b16 %v36
  %v133 = vunpack.c.l.b16 %v37
  %v134 = vunpack.c.l.b16 %v38
  %v135 = vunpack.c.l.b16 %v39
  %v136 = vunpack.c.l.b16 %v40
  %v137 = vunpack.c.l.b16 %v41
  %v138 = vunpack.c.l.b16 %v42
  %v139 = vunpack.c.l.b16 %v43
  %v140 = vunpack.c.l.b16 %v44
  %v141 = vunpack.c.l.b16 %v45
  %v142 = vunpack.c.l.b16 %v46
  %v143 = vunpack.c.l.b16 %v47
  %v144 = vunpack.c.l.b16 %v48
  %v145 = vpack.c.b16 %v130, %v129
  %v146 = vpack.c.b16 %v132, %v131
  %v147 = vpack.c.b16 %v134, %v133
  %v148 = vpack.c.b16 %v136, %v135
  %v149 = vpack.c.b16 %v138, %v137
  %v150 = vpack.c.b16 %v140, %v139
  %v151 = vpack.c.b16 %v142, %v141
  %v152 = vpack.c.b16 %v144, %v143
  %161 = vmatprep.subr.bf16.mxu0 0
  %162 = vmatpush1.bf16.msra.mxu0 %v152
  %163 = vmatprep.subr.bf16.mxu0 0
  %164 = vmatpush1.bf16.msra.mxu0 %v151
  %165 = vmatprep.subr.bf16.mxu0 0
  %166 = vmatpush1.bf16.msra.mxu0 %v150
  %167 = vmatprep.subr.bf16.mxu0 0
  %168 = vmatpush1.bf16.msra.mxu0 %v149
  %169 = vmatprep.subr.bf16.mxu0 0
  %170 = vmatpush1.bf16.msra.mxu0 %v148
  %171 = vmatprep.subr.bf16.mxu0 0
  %172 = vmatpush1.bf16.msra.mxu0 %v147
  %173 = vmatprep.subr.bf16.mxu0 0
  %174 = vmatpush1.bf16.msra.mxu0 %v146
  %175 = vmatprep.subr.bf16.mxu0 0
  %176 = vmatpush1.bf16.msra.mxu0 %v145
  %177 = vmatprep.subr.bf16.mxu0 0
  %178 = vmatpush2.bf16.msra.mxu0 0
  %179 = vmatprep.subr.bf16.mxu0 0
  %180 = vmatpush2.bf16.msra.mxu0 0
  %181 = vmatprep.subr.bf16.mxu0 0
  %182 = vmatpush2.bf16.msra.mxu0 0
  %183 = vmatprep.subr.bf16.mxu0 0
  %184 = vmatpush2.bf16.msra.mxu0 0
  %185 = vmatprep.subr.bf16.mxu0 0
  %186 = vmatpush2.bf16.msra.mxu0 0
  %187 = vmatprep.subr.bf16.mxu0 0
  %188 = vmatpush2.bf16.msra.mxu0 0
  %189 = vmatprep.subr.bf16.mxu0 0
  %190 = vmatpush2.bf16.msra.mxu0 0
  %191 = vmatprep.subr.bf16.mxu0 0
  %192 = vmatpush2.bf16.msra.mxu0 0
  %193 = vmatprep.mubr.bf16.mxu0 0
  %194 = vmatmul.mubr.bf16.gmra.mxu0 %v97
  %v195 = vpop.f32.mrf.mxu0
  %v196 = vadd.f32 0.0, %v195
  %v197 = vpop.f32.mrf.mxu0
  %v198 = vpop.f32.mrf.mxu0
  %v199 = vadd.f32 0.0, %v198
  %v200 = vpop.f32.mrf.mxu0
  %201 = vmatprep.mubr.bf16.mxu0 0
  %202 = vmatmul.mubr.bf16.gmra.mxu0 %v98
  %v203 = vpop.f32.mrf.mxu0
  %v204 = vadd.f32 0.0, %v203
  %v205 = vpop.f32.mrf.mxu0
  %v206 = vpop.f32.mrf.mxu0
  %v207 = vadd.f32 0.0, %v206
  %v208 = vpop.f32.mrf.mxu0
  %209 = vmatprep.mubr.bf16.mxu0 0
  %210 = vmatmul.mubr.bf16.gmra.mxu0 %v99
  %v211 = vpop.f32.mrf.mxu0
  %v212 = vadd.f32 0.0, %v211
  %v213 = vpop.f32.mrf.mxu0
  %v214 = vpop.f32.mrf.mxu0
  %v215 = vadd.f32 0.0, %v214
  %v216 = vpop.f32.mrf.mxu0
  %217 = vmatprep.mubr.bf16.mxu0 0
  %218 = vmatmul.mubr.bf16.gmra.mxu0 %v100
  %v219 = vpop.f32.mrf.mxu0
  %v220 = vadd.f32 0.0, %v219
  %v221 = vpop.f32.mrf.mxu0
  %v222 = vpop.f32.mrf.mxu0
  %v223 = vadd.f32 0.0, %v222
  %v224 = vpop.f32.mrf.mxu0
  %225 = vmatprep.mubr.bf16.mxu0 0
  %226 = vmatmul.mubr.bf16.gmra.mxu0 %v101
  %v227 = vpop.f32.mrf.mxu0
  %v228 = vadd.f32 0.0, %v227
  %v229 = vpop.f32.mrf.mxu0
  %v230 = vpop.f32.mrf.mxu0
  %v231 = vadd.f32 0.0, %v230
  %v232 = vpop.f32.mrf.mxu0
  %233 = vmatprep.mubr.bf16.mxu0 0
  %234 = vmatmul.mubr.bf16.gmra.mxu0 %v102
  %v235 = vpop.f32.mrf.mxu0
  %v236 = vadd.f32 0.0, %v235
  %v237 = vpop.f32.mrf.mxu0
  %v238 = vpop.f32.mrf.mxu0
  %v239 = vadd.f32 0.0, %v238
  %v240 = vpop.f32.mrf.mxu0
  %241 = vmatprep.mubr.bf16.mxu0 0
  %242 = vmatmul.mubr.bf16.gmra.mxu0 %v103
  %v243 = vpop.f32.mrf.mxu0
  %v244 = vadd.f32 0.0, %v243
  %v245 = vpop.f32.mrf.mxu0
  %v246 = vpop.f32.mrf.mxu0
  %v247 = vadd.f32 0.0, %v246
  %v248 = vpop.f32.mrf.mxu0
  %249 = vmatprep.mubr.bf16.mxu0 0
  %250 = vmatmul.mubr.bf16.gmra.mxu0 %v104
  %v251 = vpop.f32.mrf.mxu0
  %v252 = vadd.f32 0.0, %v251
  %v253 = vpop.f32.mrf.mxu0
  %v254 = vpop.f32.mrf.mxu0
  %v255 = vadd.f32 0.0, %v254
  %v256 = vpop.f32.mrf.mxu0
  %257 = vdwg.mxu0
  %v258 = vadd.f32 %v49, %v196
  %v259 = vadd.f32 %v50, %v199
  %v260 = vadd.f32 %v51, %v204
  %v261 = vadd.f32 %v52, %v207
  %v262 = vadd.f32 %v53, %v212
  %v263 = vadd.f32 %v54, %v215
  %v264 = vadd.f32 %v55, %v220
  %v265 = vadd.f32 %v56, %v223
  %v266 = vadd.f32 %v57, %v228
  %v267 = vadd.f32 %v58, %v231
  %v268 = vadd.f32 %v59, %v236
  %v269 = vadd.f32 %v60, %v239
  %v270 = vadd.f32 %v61, %v244
  %v271 = vadd.f32 %v62, %v247
  %v272 = vadd.f32 %v63, %v252
  %v273 = vadd.f32 %v64, %v255
  %v274 = vpack.c.bf16 %v199, %v196
  %v275 = vpack.c.bf16 %v207, %v204
  %v276 = vpack.c.bf16 %v215, %v212
  %v277 = vpack.c.bf16 %v223, %v220
  %v278 = vpack.c.bf16 %v231, %v228
  %v279 = vpack.c.bf16 %v239, %v236
  %v280 = vpack.c.bf16 %v247, %v244
  %v281 = vpack.c.bf16 %v255, %v252
  %282 = vmatprep.subr.bf16.mxu0 0
  %283 = vmatpush1.bf16.msra.mxu0 %v281
  %284 = vmatprep.subr.bf16.mxu0 0
  %285 = vmatpush1.bf16.msra.mxu0 %v280
  %286 = vmatprep.subr.bf16.mxu0 0
  %287 = vmatpush1.bf16.msra.mxu0 %v279
  %288 = vmatprep.subr.bf16.mxu0 0
  %289 = vmatpush1.bf16.msra.mxu0 %v278
  %290 = vmatprep.subr.bf16.mxu0 0
  %291 = vmatpush1.bf16.msra.mxu0 %v277
  %292 = vmatprep.subr.bf16.mxu0 0
  %293 = vmatpush1.bf16.msra.mxu0 %v276
  %294 = vmatprep.subr.bf16.mxu0 0
  %295 = vmatpush1.bf16.msra.mxu0 %v275
  %296 = vmatprep.subr.bf16.mxu0 0
  %297 = vmatpush1.bf16.msra.mxu0 %v274
  %298 = vmatprep.subr.bf16.mxu0 0
  %299 = vmatpush2.bf16.msra.mxu0 0
  %300 = vmatprep.subr.bf16.mxu0 0
  %301 = vmatpush2.bf16.msra.mxu0 0
  %302 = vmatprep.subr.bf16.mxu0 0
  %303 = vmatpush2.bf16.msra.mxu0 0
  %304 = vmatprep.subr.bf16.mxu0 0
  %305 = vmatpush2.bf16.msra.mxu0 0
  %306 = vmatprep.subr.bf16.mxu0 0
  %307 = vmatpush2.bf16.msra.mxu0 0
  %308 = vmatprep.subr.bf16.mxu0 0
  %309 = vmatpush2.bf16.msra.mxu0 0
  %310 = vmatprep.subr.bf16.mxu0 0
  %311 = vmatpush2.bf16.msra.mxu0 0
  %312 = vmatprep.subr.bf16.mxu0 0
  %313 = vmatpush2.bf16.msra.mxu0 0
  %314 = vmatprep.mubr.bf16.mxu0 0
  %315 = vmatmul.mubr.bf16.gmra.mxu0 %v97
  %v316 = vpop.f32.mrf.mxu0
  %v317 = vadd.f32 0.0, %v316
  %v318 = vpop.f32.mrf.mxu0
  %v319 = vpop.f32.mrf.mxu0
  %v320 = vadd.f32 0.0, %v319
  %v321 = vpop.f32.mrf.mxu0
  %322 = vmatprep.mubr.bf16.mxu0 0
  %323 = vmatmul.mubr.bf16.gmra.mxu0 %v98
  %v324 = vpop.f32.mrf.mxu0
  %v325 = vadd.f32 0.0, %v324
  %v326 = vpop.f32.mrf.mxu0
  %v327 = vpop.f32.mrf.mxu0
  %v328 = vadd.f32 0.0, %v327
  %v329 = vpop.f32.mrf.mxu0
  %330 = vmatprep.mubr.bf16.mxu0 0
  %331 = vmatmul.mubr.bf16.gmra.mxu0 %v99
  %v332 = vpop.f32.mrf.mxu0
  %v333 = vadd.f32 0.0, %v332
  %v334 = vpop.f32.mrf.mxu0
  %v335 = vpop.f32.mrf.mxu0
  %v336 = vadd.f32 0.0, %v335
  %v337 = vpop.f32.mrf.mxu0
  %338 = vmatprep.mubr.bf16.mxu0 0
  %339 = vmatmul.mubr.bf16.gmra.mxu0 %v100
  %v340 = vpop.f32.mrf.mxu0
  %v341 = vadd.f32 0.0, %v340
  %v342 = vpop.f32.mrf.mxu0
  %v343 = vpop.f32.mrf.mxu0
  %v344 = vadd.f32 0.0, %v343
  %v345 = vpop.f32.mrf.mxu0
  %346 = vmatprep.mubr.bf16.mxu0 0
  %347 = vmatmul.mubr.bf16.gmra.mxu0 %v101
  %v348 = vpop.f32.mrf.mxu0
  %v349 = vadd.f32 0.0, %v348
  %v350 = vpop.f32.mrf.mxu0
  %v351 = vpop.f32.mrf.mxu0
  %v352 = vadd.f32 0.0, %v351
  %v353 = vpop.f32.mrf.mxu0
  %354 = vmatprep.mubr.bf16.mxu0 0
  %355 = vmatmul.mubr.bf16.gmra.mxu0 %v102
  %v356 = vpop.f32.mrf.mxu0
  %v357 = vadd.f32 0.0, %v356
  %v358 = vpop.f32.mrf.mxu0
  %v359 = vpop.f32.mrf.mxu0
  %v360 = vadd.f32 0.0, %v359
  %v361 = vpop.f32.mrf.mxu0
  %362 = vmatprep.mubr.bf16.mxu0 0
  %363 = vmatmul.mubr.bf16.gmra.mxu0 %v103
  %v364 = vpop.f32.mrf.mxu0
  %v365 = vadd.f32 0.0, %v364
  %v366 = vpop.f32.mrf.mxu0
  %v367 = vpop.f32.mrf.mxu0
  %v368 = vadd.f32 0.0, %v367
  %v369 = vpop.f32.mrf.mxu0
  %370 = vmatprep.mubr.bf16.mxu0 0
  %371 = vmatmul.mubr.bf16.gmra.mxu0 %v104
  %v372 = vpop.f32.mrf.mxu0
  %v373 = vadd.f32 0.0, %v372
  %v374 = vpop.f32.mrf.mxu0
  %v375 = vpop.f32.mrf.mxu0
  %v376 = vadd.f32 0.0, %v375
  %v377 = vpop.f32.mrf.mxu0
  %378 = vdwg.mxu0
  %v379 = vadd.f32 %v258, %v317
  %v380 = vadd.f32 %v259, %v320
  %v381 = vadd.f32 %v260, %v325
  %v382 = vadd.f32 %v261, %v328
  %v383 = vadd.f32 %v262, %v333
  %v384 = vadd.f32 %v263, %v336
  %v385 = vadd.f32 %v264, %v341
  %v386 = vadd.f32 %v265, %v344
  %v387 = vadd.f32 %v266, %v349
  %v388 = vadd.f32 %v267, %v352
  %v389 = vadd.f32 %v268, %v357
  %v390 = vadd.f32 %v269, %v360
  %v391 = vadd.f32 %v270, %v365
  %v392 = vadd.f32 %v271, %v368
  %v393 = vadd.f32 %v272, %v373
  %v394 = vadd.f32 %v273, %v376
  %v395 = vmul.f32 %v379, 0.33333334
  %v396 = vmul.f32 %v380, 0.33333334
  %v397 = vmul.f32 %v381, 0.33333334
  %v398 = vmul.f32 %v382, 0.33333334
  %v399 = vmul.f32 %v383, 0.33333334
  %v400 = vmul.f32 %v384, 0.33333334
  %v401 = vmul.f32 %v385, 0.33333334
  %v402 = vmul.f32 %v386, 0.33333334
  %v403 = vmul.f32 %v387, 0.33333334
  %v404 = vmul.f32 %v388, 0.33333334
  %v405 = vmul.f32 %v389, 0.33333334
  %v406 = vmul.f32 %v390, 0.33333334
  %v407 = vmul.f32 %v391, 0.33333334
  %v408 = vmul.f32 %v392, 0.33333334
  %v409 = vmul.f32 %v393, 0.33333334
  %v410 = vmul.f32 %v394, 0.33333334
  %415 = vrot.lane.b32.xlu0 %v399, 32
  %v416 = vpop.permute.xlu0 %415
  %417 = vrot.lane.b32.xlu0 %v400, 32
  %v418 = vpop.permute.xlu0 %417
  %419 = vrot.lane.b32.xlu0 %v401, 32
  %v420 = vpop.permute.xlu0 %419
  %421 = vrot.lane.b32.xlu0 %v402, 32
  %v422 = vpop.permute.xlu0 %421
  %431 = vrot.lane.b32.xlu0 %v403, 64
  %v432 = vpop.permute.xlu0 %431
  %433 = vrot.lane.b32.xlu0 %v404, 64
  %v434 = vpop.permute.xlu0 %433
  %435 = vrot.lane.b32.xlu0 %v405, 64
  %v436 = vpop.permute.xlu0 %435
  %437 = vrot.lane.b32.xlu0 %v406, 64
  %v438 = vpop.permute.xlu0 %437
  %447 = vrot.lane.b32.xlu0 %v407, 96
  %v448 = vpop.permute.xlu0 %447
  %449 = vrot.lane.b32.xlu0 %v408, 96
  %v450 = vpop.permute.xlu0 %449
  %451 = vrot.lane.b32.xlu0 %v409, 96
  %v452 = vpop.permute.xlu0 %451
  %453 = vrot.lane.b32.xlu0 %v410, 96
  %v454 = vpop.permute.xlu0 %453
  %vm459 = vcmask 261120
  %v460 = vsel %vm459, %v395, %v416
  %v461 = vsel %vm459, %v396, %v418
  %v462 = vsel %vm459, %v397, %v420
  %v463 = vsel %vm459, %v398, %v422
  %vm464 = vcmask 523264
  %v465 = vsel %vm464, %v460, %v432
  %v466 = vsel %vm464, %v461, %v434
  %v467 = vsel %vm464, %v462, %v436
  %v468 = vsel %vm464, %v463, %v438
  %vm469 = vcmask 785408
  %v470 = vsel %vm469, %v465, %v448
  %v471 = vsel %vm469, %v466, %v450
  %v472 = vsel %vm469, %v467, %v452
  %v473 = vsel %vm469, %v468, %v454
  %474 = vst [vmem:[%s3] sm:$0xff] %v470
  %475 = vst [vmem:[%s3 + $0x8] sm:$0xff] %v471
  %476 = vst [vmem:[%s3 + $0x10] sm:$0xff] %v472
  %477 = vst [vmem:[%s3 + $0x18] sm:$0xff] %v473
  %v478 = vld [vmem:[%s1] sm:$0xf]
  %v479 = vld [vmem:[%s1 + $0x4] sm:$0xf]
  %v480 = vld [vmem:[%s1 + $0x8] sm:$0xf]
  %v481 = vld [vmem:[%s1 + $0xc] sm:$0xf]
  %v482 = vld [vmem:[%s1 + $0x10] sm:$0xf]
  %v483 = vld [vmem:[%s1 + $0x14] sm:$0xf]
  %v484 = vld [vmem:[%s1 + $0x18] sm:$0xf]
  %v485 = vld [vmem:[%s1 + $0x1c] sm:$0xf]
  %v486 = vld [vmem:[%s1 + $0x20] sm:$0xf]
  %v487 = vld [vmem:[%s1 + $0x24] sm:$0xf]
  %v488 = vld [vmem:[%s1 + $0x28] sm:$0xf]
  %v489 = vld [vmem:[%s1 + $0x2c] sm:$0xf]
  %v490 = vld [vmem:[%s1 + $0x30] sm:$0xf]
  %v491 = vld [vmem:[%s1 + $0x34] sm:$0xf]
  %v492 = vld [vmem:[%s1 + $0x38] sm:$0xf]
  %v493 = vld [vmem:[%s1 + $0x3c] sm:$0xf]
  %v494 = vpack.c.bf16 %v396, %v395
  %v495 = vpack.c.bf16 %v398, %v397
  %v496 = vpack.c.bf16 %v400, %v399
  %v497 = vpack.c.bf16 %v402, %v401
  %v498 = vpack.c.bf16 %v404, %v403
  %v499 = vpack.c.bf16 %v406, %v405
  %v500 = vpack.c.bf16 %v408, %v407
  %v501 = vpack.c.bf16 %v410, %v409
  %v518 = vunpack.c.l.b16 %v478
  %v519 = vunpack.c.l.b16 %v479
  %v520 = vunpack.c.l.b16 %v480
  %v521 = vunpack.c.l.b16 %v481
  %v522 = vunpack.c.l.b16 %v482
  %v523 = vunpack.c.l.b16 %v483
  %v524 = vunpack.c.l.b16 %v484
  %v525 = vunpack.c.l.b16 %v485
  %v526 = vunpack.c.l.b16 %v486
  %v527 = vunpack.c.l.b16 %v487
  %v528 = vunpack.c.l.b16 %v488
  %v529 = vunpack.c.l.b16 %v489
  %v530 = vunpack.c.l.b16 %v490
  %v531 = vunpack.c.l.b16 %v491
  %v532 = vunpack.c.l.b16 %v492
  %v533 = vunpack.c.l.b16 %v493
  %v534 = vpack.c.b16 %v519, %v518
  %v535 = vpack.c.b16 %v521, %v520
  %v536 = vpack.c.b16 %v523, %v522
  %v537 = vpack.c.b16 %v525, %v524
  %v538 = vpack.c.b16 %v527, %v526
  %v539 = vpack.c.b16 %v529, %v528
  %v540 = vpack.c.b16 %v531, %v530
  %v541 = vpack.c.b16 %v533, %v532
  %550 = vmatprep.subr.bf16.mxu0 0
  %551 = vmatpush1.bf16.msra.mxu0 %v501
  %552 = vmatprep.subr.bf16.mxu0 0
  %553 = vmatpush1.bf16.msra.mxu0 %v500
  %554 = vmatprep.subr.bf16.mxu0 0
  %555 = vmatpush1.bf16.msra.mxu0 %v499
  %556 = vmatprep.subr.bf16.mxu0 0
  %557 = vmatpush1.bf16.msra.mxu0 %v498
  %558 = vmatprep.subr.bf16.mxu0 0
  %559 = vmatpush1.bf16.msra.mxu0 %v497
  %560 = vmatprep.subr.bf16.mxu0 0
  %561 = vmatpush1.bf16.msra.mxu0 %v496
  %562 = vmatprep.subr.bf16.mxu0 0
  %563 = vmatpush1.bf16.msra.mxu0 %v495
  %564 = vmatprep.subr.bf16.mxu0 0
  %565 = vmatpush1.bf16.msra.mxu0 %v494
  %566 = vmatprep.subr.bf16.mxu0 0
  %567 = vmatpush2.bf16.msra.mxu0 0
  %568 = vmatprep.subr.bf16.mxu0 0
  %569 = vmatpush2.bf16.msra.mxu0 0
  %570 = vmatprep.subr.bf16.mxu0 0
  %571 = vmatpush2.bf16.msra.mxu0 0
  %572 = vmatprep.subr.bf16.mxu0 0
  %573 = vmatpush2.bf16.msra.mxu0 0
  %574 = vmatprep.subr.bf16.mxu0 0
  %575 = vmatpush2.bf16.msra.mxu0 0
  %576 = vmatprep.subr.bf16.mxu0 0
  %577 = vmatpush2.bf16.msra.mxu0 0
  %578 = vmatprep.subr.bf16.mxu0 0
  %579 = vmatpush2.bf16.msra.mxu0 0
  %580 = vmatprep.subr.bf16.mxu0 0
  %581 = vmatpush2.bf16.msra.mxu0 0
  %582 = vmatprep.mubr.bf16.mxu0 0
  %583 = vmatmul.mubr.bf16.gmra.mxu0 %v534
  %v584 = vpop.f32.mrf.mxu0
  %v585 = vadd.f32 0.0, %v584
  %v586 = vpop.f32.mrf.mxu0
  %v587 = vpop.f32.mrf.mxu0
  %v588 = vadd.f32 0.0, %v587
  %v589 = vpop.f32.mrf.mxu0
  %590 = vmatprep.mubr.bf16.mxu0 0
  %591 = vmatmul.mubr.bf16.gmra.mxu0 %v535
  %v592 = vpop.f32.mrf.mxu0
  %v593 = vadd.f32 0.0, %v592
  %v594 = vpop.f32.mrf.mxu0
  %v595 = vpop.f32.mrf.mxu0
  %v596 = vadd.f32 0.0, %v595
  %v597 = vpop.f32.mrf.mxu0
  %598 = vmatprep.mubr.bf16.mxu0 0
  %599 = vmatmul.mubr.bf16.gmra.mxu0 %v536
  %v600 = vpop.f32.mrf.mxu0
  %v601 = vadd.f32 0.0, %v600
  %v602 = vpop.f32.mrf.mxu0
  %v603 = vpop.f32.mrf.mxu0
  %v604 = vadd.f32 0.0, %v603
  %v605 = vpop.f32.mrf.mxu0
  %606 = vmatprep.mubr.bf16.mxu0 0
  %607 = vmatmul.mubr.bf16.gmra.mxu0 %v537
  %v608 = vpop.f32.mrf.mxu0
  %v609 = vadd.f32 0.0, %v608
  %v610 = vpop.f32.mrf.mxu0
  %v611 = vpop.f32.mrf.mxu0
  %v612 = vadd.f32 0.0, %v611
  %v613 = vpop.f32.mrf.mxu0
  %614 = vmatprep.mubr.bf16.mxu0 0
  %615 = vmatmul.mubr.bf16.gmra.mxu0 %v538
  %v616 = vpop.f32.mrf.mxu0
  %v617 = vadd.f32 0.0, %v616
  %v618 = vpop.f32.mrf.mxu0
  %v619 = vpop.f32.mrf.mxu0
  %v620 = vadd.f32 0.0, %v619
  %v621 = vpop.f32.mrf.mxu0
  %622 = vmatprep.mubr.bf16.mxu0 0
  %623 = vmatmul.mubr.bf16.gmra.mxu0 %v539
  %v624 = vpop.f32.mrf.mxu0
  %v625 = vadd.f32 0.0, %v624
  %v626 = vpop.f32.mrf.mxu0
  %v627 = vpop.f32.mrf.mxu0
  %v628 = vadd.f32 0.0, %v627
  %v629 = vpop.f32.mrf.mxu0
  %630 = vmatprep.mubr.bf16.mxu0 0
  %631 = vmatmul.mubr.bf16.gmra.mxu0 %v540
  %v632 = vpop.f32.mrf.mxu0
  %v633 = vadd.f32 0.0, %v632
  %v634 = vpop.f32.mrf.mxu0
  %v635 = vpop.f32.mrf.mxu0
  %v636 = vadd.f32 0.0, %v635
  %v637 = vpop.f32.mrf.mxu0
  %638 = vmatprep.mubr.bf16.mxu0 0
  %639 = vmatmul.mubr.bf16.gmra.mxu0 %v541
  %v640 = vpop.f32.mrf.mxu0
  %v641 = vadd.f32 0.0, %v640
  %v642 = vpop.f32.mrf.mxu0
  %v643 = vpop.f32.mrf.mxu0
  %v644 = vadd.f32 0.0, %v643
  %v645 = vpop.f32.mrf.mxu0
  %646 = vdwg.mxu0
  %v647 = vadd.f32 %v395, %v585
  %v648 = vadd.f32 %v396, %v588
  %v649 = vadd.f32 %v397, %v593
  %v650 = vadd.f32 %v398, %v596
  %v651 = vadd.f32 %v399, %v601
  %v652 = vadd.f32 %v400, %v604
  %v653 = vadd.f32 %v401, %v609
  %v654 = vadd.f32 %v402, %v612
  %v655 = vadd.f32 %v403, %v617
  %v656 = vadd.f32 %v404, %v620
  %v657 = vadd.f32 %v405, %v625
  %v658 = vadd.f32 %v406, %v628
  %v659 = vadd.f32 %v407, %v633
  %v660 = vadd.f32 %v408, %v636
  %v661 = vadd.f32 %v409, %v641
  %v662 = vadd.f32 %v410, %v644
  %v663 = vpack.c.bf16 %v588, %v585
  %v664 = vpack.c.bf16 %v596, %v593
  %v665 = vpack.c.bf16 %v604, %v601
  %v666 = vpack.c.bf16 %v612, %v609
  %v667 = vpack.c.bf16 %v620, %v617
  %v668 = vpack.c.bf16 %v628, %v625
  %v669 = vpack.c.bf16 %v636, %v633
  %v670 = vpack.c.bf16 %v644, %v641
  %671 = vmatprep.subr.bf16.mxu0 0
  %672 = vmatpush1.bf16.msra.mxu0 %v670
  %673 = vmatprep.subr.bf16.mxu0 0
  %674 = vmatpush1.bf16.msra.mxu0 %v669
  %675 = vmatprep.subr.bf16.mxu0 0
  %676 = vmatpush1.bf16.msra.mxu0 %v668
  %677 = vmatprep.subr.bf16.mxu0 0
  %678 = vmatpush1.bf16.msra.mxu0 %v667
  %679 = vmatprep.subr.bf16.mxu0 0
  %680 = vmatpush1.bf16.msra.mxu0 %v666
  %681 = vmatprep.subr.bf16.mxu0 0
  %682 = vmatpush1.bf16.msra.mxu0 %v665
  %683 = vmatprep.subr.bf16.mxu0 0
  %684 = vmatpush1.bf16.msra.mxu0 %v664
  %685 = vmatprep.subr.bf16.mxu0 0
  %686 = vmatpush1.bf16.msra.mxu0 %v663
  %687 = vmatprep.subr.bf16.mxu0 0
  %688 = vmatpush2.bf16.msra.mxu0 0
  %689 = vmatprep.subr.bf16.mxu0 0
  %690 = vmatpush2.bf16.msra.mxu0 0
  %691 = vmatprep.subr.bf16.mxu0 0
  %692 = vmatpush2.bf16.msra.mxu0 0
  %693 = vmatprep.subr.bf16.mxu0 0
  %694 = vmatpush2.bf16.msra.mxu0 0
  %695 = vmatprep.subr.bf16.mxu0 0
  %696 = vmatpush2.bf16.msra.mxu0 0
  %697 = vmatprep.subr.bf16.mxu0 0
  %698 = vmatpush2.bf16.msra.mxu0 0
  %699 = vmatprep.subr.bf16.mxu0 0
  %700 = vmatpush2.bf16.msra.mxu0 0
  %701 = vmatprep.subr.bf16.mxu0 0
  %702 = vmatpush2.bf16.msra.mxu0 0
  %703 = vmatprep.mubr.bf16.mxu0 0
  %704 = vmatmul.mubr.bf16.gmra.mxu0 %v534
  %v705 = vpop.f32.mrf.mxu0
  %v706 = vadd.f32 0.0, %v705
  %v707 = vpop.f32.mrf.mxu0
  %v708 = vpop.f32.mrf.mxu0
  %v709 = vadd.f32 0.0, %v708
  %v710 = vpop.f32.mrf.mxu0
  %711 = vmatprep.mubr.bf16.mxu0 0
  %712 = vmatmul.mubr.bf16.gmra.mxu0 %v535
  %v713 = vpop.f32.mrf.mxu0
  %v714 = vadd.f32 0.0, %v713
  %v715 = vpop.f32.mrf.mxu0
  %v716 = vpop.f32.mrf.mxu0
  %v717 = vadd.f32 0.0, %v716
  %v718 = vpop.f32.mrf.mxu0
  %719 = vmatprep.mubr.bf16.mxu0 0
  %720 = vmatmul.mubr.bf16.gmra.mxu0 %v536
  %v721 = vpop.f32.mrf.mxu0
  %v722 = vadd.f32 0.0, %v721
  %v723 = vpop.f32.mrf.mxu0
  %v724 = vpop.f32.mrf.mxu0
  %v725 = vadd.f32 0.0, %v724
  %v726 = vpop.f32.mrf.mxu0
  %727 = vmatprep.mubr.bf16.mxu0 0
  %728 = vmatmul.mubr.bf16.gmra.mxu0 %v537
  %v729 = vpop.f32.mrf.mxu0
  %v730 = vadd.f32 0.0, %v729
  %v731 = vpop.f32.mrf.mxu0
  %v732 = vpop.f32.mrf.mxu0
  %v733 = vadd.f32 0.0, %v732
  %v734 = vpop.f32.mrf.mxu0
  %735 = vmatprep.mubr.bf16.mxu0 0
  %736 = vmatmul.mubr.bf16.gmra.mxu0 %v538
  %v737 = vpop.f32.mrf.mxu0
  %v738 = vadd.f32 0.0, %v737
  %v739 = vpop.f32.mrf.mxu0
  %v740 = vpop.f32.mrf.mxu0
  %v741 = vadd.f32 0.0, %v740
  %v742 = vpop.f32.mrf.mxu0
  %743 = vmatprep.mubr.bf16.mxu0 0
  %744 = vmatmul.mubr.bf16.gmra.mxu0 %v539
  %v745 = vpop.f32.mrf.mxu0
  %v746 = vadd.f32 0.0, %v745
  %v747 = vpop.f32.mrf.mxu0
  %v748 = vpop.f32.mrf.mxu0
  %v749 = vadd.f32 0.0, %v748
  %v750 = vpop.f32.mrf.mxu0
  %751 = vmatprep.mubr.bf16.mxu0 0
  %752 = vmatmul.mubr.bf16.gmra.mxu0 %v540
  %v753 = vpop.f32.mrf.mxu0
  %v754 = vadd.f32 0.0, %v753
  %v755 = vpop.f32.mrf.mxu0
  %v756 = vpop.f32.mrf.mxu0
  %v757 = vadd.f32 0.0, %v756
  %v758 = vpop.f32.mrf.mxu0
  %759 = vmatprep.mubr.bf16.mxu0 0
  %760 = vmatmul.mubr.bf16.gmra.mxu0 %v541
  %v761 = vpop.f32.mrf.mxu0
  %v762 = vadd.f32 0.0, %v761
  %v763 = vpop.f32.mrf.mxu0
  %v764 = vpop.f32.mrf.mxu0
  %v765 = vadd.f32 0.0, %v764
  %v766 = vpop.f32.mrf.mxu0
  %767 = vdwg.mxu0
  %v768 = vadd.f32 %v647, %v706
  %v769 = vadd.f32 %v648, %v709
  %v770 = vadd.f32 %v649, %v714
  %v771 = vadd.f32 %v650, %v717
  %v772 = vadd.f32 %v651, %v722
  %v773 = vadd.f32 %v652, %v725
  %v774 = vadd.f32 %v653, %v730
  %v775 = vadd.f32 %v654, %v733
  %v776 = vadd.f32 %v655, %v738
  %v777 = vadd.f32 %v656, %v741
  %v778 = vadd.f32 %v657, %v746
  %v779 = vadd.f32 %v658, %v749
  %v780 = vadd.f32 %v659, %v754
  %v781 = vadd.f32 %v660, %v757
  %v782 = vadd.f32 %v661, %v762
  %v783 = vadd.f32 %v662, %v765
  %v784 = vmul.f32 %v768, 0.33333334
  %v785 = vmul.f32 %v769, 0.33333334
  %v786 = vmul.f32 %v770, 0.33333334
  %v787 = vmul.f32 %v771, 0.33333334
  %v788 = vmul.f32 %v772, 0.33333334
  %v789 = vmul.f32 %v773, 0.33333334
  %v790 = vmul.f32 %v774, 0.33333334
  %v791 = vmul.f32 %v775, 0.33333334
  %v792 = vmul.f32 %v776, 0.33333334
  %v793 = vmul.f32 %v777, 0.33333334
  %v794 = vmul.f32 %v778, 0.33333334
  %v795 = vmul.f32 %v779, 0.33333334
  %v796 = vmul.f32 %v780, 0.33333334
  %v797 = vmul.f32 %v781, 0.33333334
  %v798 = vmul.f32 %v782, 0.33333334
  %v799 = vmul.f32 %v783, 0.33333334
  %804 = vrot.lane.b32.xlu0 %v788, 32
  %v805 = vpop.permute.xlu0 %804
  %806 = vrot.lane.b32.xlu0 %v789, 32
  %v807 = vpop.permute.xlu0 %806
  %808 = vrot.lane.b32.xlu0 %v790, 32
  %v809 = vpop.permute.xlu0 %808
  %810 = vrot.lane.b32.xlu0 %v791, 32
  %v811 = vpop.permute.xlu0 %810
  %820 = vrot.lane.b32.xlu0 %v792, 64
  %v821 = vpop.permute.xlu0 %820
  %822 = vrot.lane.b32.xlu0 %v793, 64
  %v823 = vpop.permute.xlu0 %822
  %824 = vrot.lane.b32.xlu0 %v794, 64
  %v825 = vpop.permute.xlu0 %824
  %826 = vrot.lane.b32.xlu0 %v795, 64
  %v827 = vpop.permute.xlu0 %826
  %836 = vrot.lane.b32.xlu0 %v796, 96
  %v837 = vpop.permute.xlu0 %836
  %838 = vrot.lane.b32.xlu0 %v797, 96
  %v839 = vpop.permute.xlu0 %838
  %840 = vrot.lane.b32.xlu0 %v798, 96
  %v841 = vpop.permute.xlu0 %840
  %842 = vrot.lane.b32.xlu0 %v799, 96
  %v843 = vpop.permute.xlu0 %842
  %v848 = vsel %vm459, %v784, %v805
  %v849 = vsel %vm459, %v785, %v807
  %v850 = vsel %vm459, %v786, %v809
  %v851 = vsel %vm459, %v787, %v811
  %v852 = vsel %vm464, %v848, %v821
  %v853 = vsel %vm464, %v849, %v823
  %v854 = vsel %vm464, %v850, %v825
  %v855 = vsel %vm464, %v851, %v827
  %v856 = vsel %vm469, %v852, %v837
  %v857 = vsel %vm469, %v853, %v839
  %v858 = vsel %vm469, %v854, %v841
  %v859 = vsel %vm469, %v855, %v843
  %860 = vst [vmem:[%s4] sm:$0xff] %v856
  %861 = vst [vmem:[%s4 + $0x8] sm:$0xff] %v857
  %862 = vst [vmem:[%s4 + $0x10] sm:$0xff] %v858
  %863 = vst [vmem:[%s4 + $0x18] sm:$0xff] %v859
  // Predicated region
  $region14: #{bipn_forward.2} parent=0 // pred_check
    _
  $region15: #{bipn_forward.2} parent=0 // pred_check_branch
    %865 = sbr.rel (0) target = $region17
  $region16: #{bipn_forward.2} parent=0 // pred_region
    _
  $region17: #{bipn_forward.2} parent=0 // pred_fallthru
    _
  // Predicated region
  $region18: #{bipn_forward.2} parent=0 // pred_check
    _
  $region19: #{bipn_forward.2} parent=0 // pred_check_branch
    %867 = sbr.rel (0) target = $region21
  $region20: #{bipn_forward.2} parent=0 // pred_region
    _
  $region21: #{bipn_forward.2} parent=0 // pred_fallthru
    _
  // Predicated region
  $region22: #{bipn_forward.2} parent=0 // pred_check
    _
  $region23: #{bipn_forward.2} parent=0 // pred_check_branch
    %869 = sbr.rel (0) target = $region25
  $region24: #{bipn_forward.2} parent=0 // pred_region
    _
  $region25: #{bipn_forward.2} parent=0 // pred_fallthru
    _
  // Predicated region
  $region26: #{bipn_forward.2} parent=0 // pred_check
    _
  $region27: #{bipn_forward.2} parent=0 // pred_check_branch
    %871 = sbr.rel (0) target = $region29
  $region28: #{bipn_forward.2} parent=0 // pred_region
    _
  $region29: #{bipn_forward.2} parent=0 // pred_fallthru
    _

// kernel: bipn_forward.3
$region0: #{bipn_forward.3}
  #allocation0 [shape = 'u32[]', space=smem, size = 0x4, offset = 0x4, fixed_abs, tag = 'smem constant byte address 0x4 - core index']
  #allocation1 [shape = 'u32[144,128]{1,0:T(1,128)}', space=vmem, size = 0x12000, scoped, tag = 'internal scratch']
  %s0 = inlined_call_operand.vmem [shape: bf16[96,64], index: 0, kind: input, shape index: {}]
  %s1 = inlined_call_operand.vmem [shape: f32[96,96], index: 1, kind: input, shape index: {}]
  %s2 = inlined_call_operand.vmem [shape: bf16[64,96], index: 2, kind: input, shape index: {}]
  %s3 = inlined_call_operand.vmem [shape: f32[24,128], index: 3, kind: output, shape index: {}]
  %s4 = sld [smem:[#allocation0]]
  $region22: #{bipn_forward.3} parent=0
    _
  %s6 = ssub.s32 1, %s4
  %s7 = scalar_select 0, %s6, %s4
  // Predicated region
  $region2: #{bipn_forward.3} parent=0 // pred_check
    _
  $region3: #{bipn_forward.3} parent=0 // pred_check_branch
    %9 = sbr.rel (0) target = $region5
  $region4: #{bipn_forward.3} parent=0 // pred_region
    _
  $region5: #{bipn_forward.3} parent=0 // pred_fallthru
    _
  // Predicated region
  $region6: #{bipn_forward.3} parent=0 // pred_check
    _
  $region7: #{bipn_forward.3} parent=0 // pred_check_branch
    %11 = sbr.rel (0) target = $region9
  $region8: #{bipn_forward.3} parent=0 // pred_region
    _
  $region9: #{bipn_forward.3} parent=0 // pred_fallthru
    _
  // Predicated region
  $region10: #{bipn_forward.3} parent=0 // pred_check
    _
  $region11: #{bipn_forward.3} parent=0 // pred_check_branch
    %13 = sbr.rel (0) target = $region13
  $region12: #{bipn_forward.3} parent=0 // pred_region
    _
  $region13: #{bipn_forward.3} parent=0 // pred_fallthru
    _
  %v15 = vld [vmem:[%s0] sm:$0xf]
  %v16 = vld [vmem:[%s0 + $0x4] sm:$0xf]
  %v17 = vld [vmem:[%s0 + $0x8] sm:$0xf]
  %v18 = vld [vmem:[%s0 + $0xc] sm:$0xf]
  %v19 = vld [vmem:[%s0 + $0x10] sm:$0xf]
  %v20 = vld [vmem:[%s0 + $0x14] sm:$0xf]
  %v21 = vld [vmem:[%s0 + $0x18] sm:$0xf]
  %v22 = vld [vmem:[%s0 + $0x1c] sm:$0xf]
  %v23 = vld [vmem:[%s0 + $0x20] sm:$0xf]
  %v24 = vld [vmem:[%s0 + $0x24] sm:$0xf]
  %v25 = vld [vmem:[%s0 + $0x28] sm:$0xf]
  %v26 = vld [vmem:[%s0 + $0x2c] sm:$0xf]
  %v27 = vld [vmem:[%s2] sm:$0xf]
  %v28 = vld [vmem:[%s2 + $0x4] sm:$0xf]
  %v29 = vld [vmem:[%s2 + $0x8] sm:$0xf]
  %v30 = vld [vmem:[%s2 + $0xc] sm:$0xf]
  %v31 = vld [vmem:[%s2 + $0x10] sm:$0xf]
  %v32 = vld [vmem:[%s2 + $0x14] sm:$0xf]
  %v33 = vld [vmem:[%s2 + $0x18] sm:$0xf]
  %v34 = vld [vmem:[%s2 + $0x1c] sm:$0xf]
  %v35 = vld [vmem:[%s1] sm:$0xff]
  %v36 = vld [vmem:[%s1 + $0x8] sm:$0xff]
  %v37 = vld [vmem:[%s1 + $0x10] sm:$0xff]
  %v38 = vld [vmem:[%s1 + $0x18] sm:$0xff]
  %v39 = vld [vmem:[%s1 + $0x20] sm:$0xff]
  %v40 = vld [vmem:[%s1 + $0x28] sm:$0xff]
  %v41 = vld [vmem:[%s1 + $0x30] sm:$0xff]
  %v42 = vld [vmem:[%s1 + $0x38] sm:$0xff]
  %v43 = vld [vmem:[%s1 + $0x40] sm:$0xff]
  %v44 = vld [vmem:[%s1 + $0x48] sm:$0xff]
  %v45 = vld [vmem:[%s1 + $0x50] sm:$0xff]
  %v46 = vld [vmem:[%s1 + $0x58] sm:$0xff]
  %v59 = vunpack.c.l.b16 %v15
  %v60 = vunpack.c.l.b16 %v16
  %v61 = vunpack.c.l.b16 %v17
  %v62 = vunpack.c.l.b16 %v18
  %v63 = vunpack.c.l.b16 %v19
  %v64 = vunpack.c.l.b16 %v20
  %v65 = vunpack.c.l.b16 %v21
  %v66 = vunpack.c.l.b16 %v22
  %v67 = vunpack.c.l.b16 %v23
  %v68 = vunpack.c.l.b16 %v24
  %v69 = vunpack.c.l.b16 %v25
  %v70 = vunpack.c.l.b16 %v26
  %v71 = vpack.c.b16 %v60, %v59
  %v72 = vpack.c.b16 %v62, %v61
  %v73 = vpack.c.b16 %v64, %v63
  %v74 = vpack.c.b16 %v66, %v65
  %v75 = vpack.c.b16 %v68, %v67
  %v76 = vpack.c.b16 %v70, %v69
  %v85 = vunpack.c.l.b16 %v27
  %v86 = vunpack.c.l.b16 %v28
  %v87 = vunpack.c.l.b16 %v29
  %v88 = vunpack.c.l.b16 %v30
  %v89 = vunpack.c.l.b16 %v31
  %v90 = vunpack.c.l.b16 %v32
  %v91 = vunpack.c.l.b16 %v33
  %v92 = vunpack.c.l.b16 %v34
  %v93 = vpack.c.b16 %v86, %v85
  %v94 = vpack.c.b16 %v88, %v87
  %v95 = vpack.c.b16 %v90, %v89
  %v96 = vpack.c.b16 %v92, %v91
  %vm101 = vcmask 523264
  %v103 = vsel %vm101, %v71, 0
  %v106 = vsel %vm101, %v72, 0
  %v109 = vsel %vm101, %v73, 0
  %v112 = vsel %vm101, %v74, 0
  %v115 = vsel %vm101, %v75, 0
  %v118 = vsel %vm101, %v76, 0
  %120 = vmatprep.subr.bf16.mxu0 0
  %121 = vmatpush1.bf16.msra.mxu0 0
  %122 = vmatprep.subr.bf16.mxu0 0
  %123 = vmatpush1.bf16.msra.mxu0 0
  %124 = vmatprep.subr.bf16.mxu0 0
  %125 = vmatpush1.bf16.msra.mxu0 0
  %126 = vmatprep.subr.bf16.mxu0 0
  %127 = vmatpush1.bf16.msra.mxu0 0
  %128 = vmatprep.subr.bf16.mxu0 0
  %129 = vmatpush1.bf16.msra.mxu0 %v96
  %130 = vmatprep.subr.bf16.mxu0 0
  %131 = vmatpush1.bf16.msra.mxu0 %v95
  %132 = vmatprep.subr.bf16.mxu0 0
  %133 = vmatpush1.bf16.msra.mxu0 %v94
  %134 = vmatprep.subr.bf16.mxu0 0
  %135 = vmatpush1.bf16.msra.mxu0 %v93
  %136 = vmatprep.subr.bf16.mxu0 0
  %137 = vmatpush2.bf16.msra.mxu0 0
  %138 = vmatprep.subr.bf16.mxu0 0
  %139 = vmatpush2.bf16.msra.mxu0 0
  %140 = vmatprep.subr.bf16.mxu0 0
  %141 = vmatpush2.bf16.msra.mxu0 0
  %142 = vmatprep.subr.bf16.mxu0 0
  %143 = vmatpush2.bf16.msra.mxu0 0
  %144 = vmatprep.subr.bf16.mxu0 0
  %145 = vmatpush2.bf16.msra.mxu0 0
  %146 = vmatprep.subr.bf16.mxu0 0
  %147 = vmatpush2.bf16.msra.mxu0 0
  %148 = vmatprep.subr.bf16.mxu0 0
  %149 = vmatpush2.bf16.msra.mxu0 0
  %150 = vmatprep.subr.bf16.mxu0 0
  %151 = vmatpush2.bf16.msra.mxu0 0
  %152 = vmatprep.mubr.bf16.mxu0 0
  %153 = vmatmul.mubr.bf16.gmra.mxu0 %v103
  %v154 = vpop.f32.mrf.mxu0
  %v155 = vadd.f32 %v35, %v154
  %v156 = vpop.f32.mrf.mxu0
  %v157 = vpop.f32.mrf.mxu0
  %v158 = vadd.f32 %v36, %v157
  %v159 = vpop.f32.mrf.mxu0
  %160 = vmatprep.mubr.bf16.mxu0 0
  %161 = vmatmul.mubr.bf16.gmra.mxu0 %v106
  %v162 = vpop.f32.mrf.mxu0
  %v163 = vadd.f32 %v37, %v162
  %v164 = vpop.f32.mrf.mxu0
  %v165 = vpop.f32.mrf.mxu0
  %v166 = vadd.f32 %v38, %v165
  %v167 = vpop.f32.mrf.mxu0
  %168 = vmatprep.mubr.bf16.mxu0 0
  %169 = vmatmul.mubr.bf16.gmra.mxu0 %v109
  %v170 = vpop.f32.mrf.mxu0
  %v171 = vadd.f32 %v39, %v170
  %v172 = vpop.f32.mrf.mxu0
  %v173 = vpop.f32.mrf.mxu0
  %v174 = vadd.f32 %v40, %v173
  %v175 = vpop.f32.mrf.mxu0
  %176 = vmatprep.mubr.bf16.mxu0 0
  %177 = vmatmul.mubr.bf16.gmra.mxu0 %v112
  %v178 = vpop.f32.mrf.mxu0
  %v179 = vadd.f32 %v41, %v178
  %v180 = vpop.f32.mrf.mxu0
  %v181 = vpop.f32.mrf.mxu0
  %v182 = vadd.f32 %v42, %v181
  %v183 = vpop.f32.mrf.mxu0
  %184 = vmatprep.mubr.bf16.mxu0 0
  %185 = vmatmul.mubr.bf16.gmra.mxu0 %v115
  %v186 = vpop.f32.mrf.mxu0
  %v187 = vadd.f32 %v43, %v186
  %v188 = vpop.f32.mrf.mxu0
  %v189 = vpop.f32.mrf.mxu0
  %v190 = vadd.f32 %v44, %v189
  %v191 = vpop.f32.mrf.mxu0
  %192 = vmatprep.mubr.bf16.mxu0 0
  %193 = vmatmul.mubr.bf16.gmra.mxu0 %v118
  %v194 = vpop.f32.mrf.mxu0
  %v195 = vadd.f32 %v45, %v194
  %v196 = vpop.f32.mrf.mxu0
  %v197 = vpop.f32.mrf.mxu0
  %v198 = vadd.f32 %v46, %v197
  %v199 = vpop.f32.mrf.mxu0
  %200 = vdwg.mxu0
  %201 = vrot.lane.b32.xlu0 %v93, 96
  %v202 = vpop.permute.xlu0 %201
  %203 = vrot.lane.b32.xlu0 %v94, 96
  %v204 = vpop.permute.xlu0 %203
  %205 = vrot.lane.b32.xlu0 %v95, 96
  %v206 = vpop.permute.xlu0 %205
  %207 = vrot.lane.b32.xlu0 %v96, 96
  %v208 = vpop.permute.xlu0 %207
  %225 = vrot.lane.b32.xlu0 %v35, 96
  %v226 = vpop.permute.xlu0 %225
  %227 = vrot.lane.b32.xlu0 %v36, 96
  %v228 = vpop.permute.xlu0 %227
  %229 = vrot.lane.b32.xlu0 %v37, 96
  %v230 = vpop.permute.xlu0 %229
  %231 = vrot.lane.b32.xlu0 %v38, 96
  %v232 = vpop.permute.xlu0 %231
  %233 = vrot.lane.b32.xlu0 %v39, 96
  %v234 = vpop.permute.xlu0 %233
  %235 = vrot.lane.b32.xlu0 %v40, 96
  %v236 = vpop.permute.xlu0 %235
  %237 = vrot.lane.b32.xlu0 %v41, 96
  %v238 = vpop.permute.xlu0 %237
  %239 = vrot.lane.b32.xlu0 %v42, 96
  %v240 = vpop.permute.xlu0 %239
  %241 = vrot.lane.b32.xlu0 %v43, 96
  %v242 = vpop.permute.xlu0 %241
  %243 = vrot.lane.b32.xlu0 %v44, 96
  %v244 = vpop.permute.xlu0 %243
  %245 = vrot.lane.b32.xlu0 %v45, 96
  %v246 = vpop.permute.xlu0 %245
  %247 = vrot.lane.b32.xlu0 %v46, 96
  %v248 = vpop.permute.xlu0 %247
  %261 = vmatprep.subr.bf16.mxu0 0
  %262 = vmatpush1.bf16.msra.mxu0 0
  %263 = vmatprep.subr.bf16.mxu0 0
  %264 = vmatpush1.bf16.msra.mxu0 0
  %265 = vmatprep.subr.bf16.mxu0 0
  %266 = vmatpush1.bf16.msra.mxu0 0
  %267 = vmatprep.subr.bf16.mxu0 0
  %268 = vmatpush1.bf16.msra.mxu0 0
  %269 = vmatprep.subr.bf16.mxu0 0
  %270 = vmatpush1.bf16.msra.mxu0 %v208
  %271 = vmatprep.subr.bf16.mxu0 0
  %272 = vmatpush1.bf16.msra.mxu0 %v206
  %273 = vmatprep.subr.bf16.mxu0 0
  %274 = vmatpush1.bf16.msra.mxu0 %v204
  %275 = vmatprep.subr.bf16.mxu0 0
  %276 = vmatpush1.bf16.msra.mxu0 %v202
  %277 = vmatprep.subr.bf16.mxu0 0
  %278 = vmatpush2.bf16.msra.mxu0 0
  %279 = vmatprep.subr.bf16.mxu0 0
  %280 = vmatpush2.bf16.msra.mxu0 0
  %281 = vmatprep.subr.bf16.mxu0 0
  %282 = vmatpush2.bf16.msra.mxu0 0
  %283 = vmatprep.subr.bf16.mxu0 0
  %284 = vmatpush2.bf16.msra.mxu0 0
  %285 = vmatprep.subr.bf16.mxu0 0
  %286 = vmatpush2.bf16.msra.mxu0 0
  %287 = vmatprep.subr.bf16.mxu0 0
  %288 = vmatpush2.bf16.msra.mxu0 0
  %289 = vmatprep.subr.bf16.mxu0 0
  %290 = vmatpush2.bf16.msra.mxu0 0
  %291 = vmatprep.subr.bf16.mxu0 0
  %292 = vmatpush2.bf16.msra.mxu0 0
  %293 = vmatprep.mubr.bf16.mxu0 0
  %294 = vmatmul.mubr.bf16.gmra.mxu0 %v103
  %v295 = vpop.f32.mrf.mxu0
  %v296 = vadd.f32 %v226, %v295
  %v297 = vpop.f32.mrf.mxu0
  %v298 = vpop.f32.mrf.mxu0
  %v299 = vadd.f32 %v228, %v298
  %v300 = vpop.f32.mrf.mxu0
  %301 = vmatprep.mubr.bf16.mxu0 0
  %302 = vmatmul.mubr.bf16.gmra.mxu0 %v106
  %v303 = vpop.f32.mrf.mxu0
  %v304 = vadd.f32 %v230, %v303
  %v305 = vpop.f32.mrf.mxu0
  %v306 = vpop.f32.mrf.mxu0
  %v307 = vadd.f32 %v232, %v306
  %v308 = vpop.f32.mrf.mxu0
  %309 = vmatprep.mubr.bf16.mxu0 0
  %310 = vmatmul.mubr.bf16.gmra.mxu0 %v109
  %v311 = vpop.f32.mrf.mxu0
  %v312 = vadd.f32 %v234, %v311
  %v313 = vpop.f32.mrf.mxu0
  %v314 = vpop.f32.mrf.mxu0
  %v315 = vadd.f32 %v236, %v314
  %v316 = vpop.f32.mrf.mxu0
  %317 = vmatprep.mubr.bf16.mxu0 0
  %318 = vmatmul.mubr.bf16.gmra.mxu0 %v112
  %v319 = vpop.f32.mrf.mxu0
  %v320 = vadd.f32 %v238, %v319
  %v321 = vpop.f32.mrf.mxu0
  %v322 = vpop.f32.mrf.mxu0
  %v323 = vadd.f32 %v240, %v322
  %v324 = vpop.f32.mrf.mxu0
  %325 = vmatprep.mubr.bf16.mxu0 0
  %326 = vmatmul.mubr.bf16.gmra.mxu0 %v115
  %v327 = vpop.f32.mrf.mxu0
  %v328 = vadd.f32 %v242, %v327
  %v329 = vpop.f32.mrf.mxu0
  %v330 = vpop.f32.mrf.mxu0
  %v331 = vadd.f32 %v244, %v330
  %v332 = vpop.f32.mrf.mxu0
  %333 = vmatprep.mubr.bf16.mxu0 0
  %334 = vmatmul.mubr.bf16.gmra.mxu0 %v118
  %v335 = vpop.f32.mrf.mxu0
  %v336 = vadd.f32 %v246, %v335
  %v337 = vpop.f32.mrf.mxu0
  %v338 = vpop.f32.mrf.mxu0
  %v339 = vadd.f32 %v248, %v338
  %v340 = vpop.f32.mrf.mxu0
  %341 = vdwg.mxu0
  %v342 = vxor.u32 %v155, 2147483648
  %v343 = vxor.u32 %v158, 2147483648
  %v344 = vxor.u32 %v163, 2147483648
  %v345 = vxor.u32 %v166, 2147483648
  %v346 = vxor.u32 %v171, 2147483648
  %v347 = vxor.u32 %v174, 2147483648
  %v348 = vxor.u32 %v179, 2147483648
  %v349 = vxor.u32 %v182, 2147483648
  %v350 = vxor.u32 %v187, 2147483648
  %v351 = vxor.u32 %v190, 2147483648
  %v352 = vxor.u32 %v195, 2147483648
  %v353 = vxor.u32 %v198, 2147483648
  %v354 = vmul.f32 %v342, 1.442695
  %v355 = vpow.pop %v354
  %v356 = vmul.f32 %v343, 1.442695
  %v357 = vpow.pop %v356
  %v358 = vmul.f32 %v344, 1.442695
  %v359 = vpow.pop %v358
  %v360 = vmul.f32 %v345, 1.442695
  %v361 = vpow.pop %v360
  %v362 = vmul.f32 %v346, 1.442695
  %v363 = vpow.pop %v362
  %v364 = vmul.f32 %v347, 1.442695
  %v365 = vpow.pop %v364
  %v366 = vmul.f32 %v348, 1.442695
  %v367 = vpow.pop %v366
  %v368 = vmul.f32 %v349, 1.442695
  %v369 = vpow.pop %v368
  %v370 = vmul.f32 %v350, 1.442695
  %v371 = vpow.pop %v370
  %v372 = vmul.f32 %v351, 1.442695
  %v373 = vpow.pop %v372
  %v374 = vmul.f32 %v352, 1.442695
  %v375 = vpow.pop %v374
  %v376 = vmul.f32 %v353, 1.442695
  %v377 = vpow.pop %v376
  %v378 = vadd.f32 %v355, 1.0
  %v379 = vadd.f32 %v357, 1.0
  %v380 = vadd.f32 %v359, 1.0
  %v381 = vadd.f32 %v361, 1.0
  %v382 = vadd.f32 %v363, 1.0
  %v383 = vadd.f32 %v365, 1.0
  %v384 = vadd.f32 %v367, 1.0
  %v385 = vadd.f32 %v369, 1.0
  %v386 = vadd.f32 %v371, 1.0
  %v387 = vadd.f32 %v373, 1.0
  %v388 = vadd.f32 %v375, 1.0
  %v389 = vadd.f32 %v377, 1.0
  %v390 = vrcp.pop %v378
  %v391 = vmul.f32 1.0, %v390
  %v392 = vrcp.pop %v379
  %v393 = vmul.f32 1.0, %v392
  %v394 = vrcp.pop %v380
  %v395 = vmul.f32 1.0, %v394
  %v396 = vrcp.pop %v381
  %v397 = vmul.f32 1.0, %v396
  %v398 = vrcp.pop %v382
  %v399 = vmul.f32 1.0, %v398
  %v400 = vrcp.pop %v383
  %v401 = vmul.f32 1.0, %v400
  %v402 = vrcp.pop %v384
  %v403 = vmul.f32 1.0, %v402
  %v404 = vrcp.pop %v385
  %v405 = vmul.f32 1.0, %v404
  %v406 = vrcp.pop %v386
  %v407 = vmul.f32 1.0, %v406
  %v408 = vrcp.pop %v387
  %v409 = vmul.f32 1.0, %v408
  %v410 = vrcp.pop %v388
  %v411 = vmul.f32 1.0, %v410
  %v412 = vrcp.pop %v389
  %v413 = vmul.f32 1.0, %v412
  %v414 = vxor.u32 %v296, 2147483648
  %v415 = vxor.u32 %v299, 2147483648
  %v416 = vxor.u32 %v304, 2147483648
  %v417 = vxor.u32 %v307, 2147483648
  %v418 = vxor.u32 %v312, 2147483648
  %v419 = vxor.u32 %v315, 2147483648
  %v420 = vxor.u32 %v320, 2147483648
  %v421 = vxor.u32 %v323, 2147483648
  %v422 = vxor.u32 %v328, 2147483648
  %v423 = vxor.u32 %v331, 2147483648
  %v424 = vxor.u32 %v336, 2147483648
  %v425 = vxor.u32 %v339, 2147483648
  %v426 = vmul.f32 %v414, 1.442695
  %v427 = vpow.pop %v426
  %v428 = vmul.f32 %v415, 1.442695
  %v429 = vpow.pop %v428
  %v430 = vmul.f32 %v416, 1.442695
  %v431 = vpow.pop %v430
  %v432 = vmul.f32 %v417, 1.442695
  %v433 = vpow.pop %v432
  %v434 = vmul.f32 %v418, 1.442695
  %v435 = vpow.pop %v434
  %v436 = vmul.f32 %v419, 1.442695
  %v437 = vpow.pop %v436
  %v438 = vmul.f32 %v420, 1.442695
  %v439 = vpow.pop %v438
  %v440 = vmul.f32 %v421, 1.442695
  %v441 = vpow.pop %v440
  %v442 = vmul.f32 %v422, 1.442695
  %v443 = vpow.pop %v442
  %v444 = vmul.f32 %v423, 1.442695
  %v445 = vpow.pop %v444
  %v446 = vmul.f32 %v424, 1.442695
  %v447 = vpow.pop %v446
  %v448 = vmul.f32 %v425, 1.442695
  %v449 = vpow.pop %v448
  %v450 = vadd.f32 %v427, 1.0
  %v451 = vadd.f32 %v429, 1.0
  %v452 = vadd.f32 %v431, 1.0
  %v453 = vadd.f32 %v433, 1.0
  %v454 = vadd.f32 %v435, 1.0
  %v455 = vadd.f32 %v437, 1.0
  %v456 = vadd.f32 %v439, 1.0
  %v457 = vadd.f32 %v441, 1.0
  %v458 = vadd.f32 %v443, 1.0
  %v459 = vadd.f32 %v445, 1.0
  %v460 = vadd.f32 %v447, 1.0
  %v461 = vadd.f32 %v449, 1.0
  %v462 = vrcp.pop %v450
  %v463 = vmul.f32 1.0, %v462
  %v464 = vrcp.pop %v451
  %v465 = vmul.f32 1.0, %v464
  %v466 = vrcp.pop %v452
  %v467 = vmul.f32 1.0, %v466
  %v468 = vrcp.pop %v453
  %v469 = vmul.f32 1.0, %v468
  %v470 = vrcp.pop %v454
  %v471 = vmul.f32 1.0, %v470
  %v472 = vrcp.pop %v455
  %v473 = vmul.f32 1.0, %v472
  %v474 = vrcp.pop %v456
  %v475 = vmul.f32 1.0, %v474
  %v476 = vrcp.pop %v457
  %v477 = vmul.f32 1.0, %v476
  %v478 = vrcp.pop %v458
  %v479 = vmul.f32 1.0, %v478
  %v480 = vrcp.pop %v459
  %v481 = vmul.f32 1.0, %v480
  %v482 = vrcp.pop %v460
  %v483 = vmul.f32 1.0, %v482
  %v484 = vrcp.pop %v461
  %v485 = vmul.f32 1.0, %v484
  %v486 = vunpack.c.l.bf16 %v15
  %v487 = vunpack.c.l.bf16 %v16
  %v488 = vunpack.c.l.bf16 %v17
  %v489 = vunpack.c.l.bf16 %v18
  %v490 = vunpack.c.l.bf16 %v19
  %v491 = vunpack.c.l.bf16 %v20
  %v492 = vunpack.c.l.bf16 %v21
  %v493 = vunpack.c.l.bf16 %v22
  %v494 = vunpack.c.l.bf16 %v23
  %v495 = vunpack.c.l.bf16 %v24
  %v496 = vunpack.c.l.bf16 %v25
  %v497 = vunpack.c.l.bf16 %v26
  %v498 = vmul.f32 %v391, %v486
  %v499 = vmul.f32 %v393, %v487
  %v500 = vmul.f32 %v395, %v488
  %v501 = vmul.f32 %v397, %v489
  %v502 = vmul.f32 %v399, %v490
  %v503 = vmul.f32 %v401, %v491
  %v504 = vmul.f32 %v403, %v492
  %v505 = vmul.f32 %v405, %v493
  %v506 = vmul.f32 %v407, %v494
  %v507 = vmul.f32 %v409, %v495
  %v508 = vmul.f32 %v411, %v496
  %v509 = vmul.f32 %v413, %v497
  %v510 = vpack.c.bf16 %v499, %v498
  %v511 = vpack.c.bf16 %v501, %v500
  %v512 = vpack.c.bf16 %v503, %v502
  %v513 = vpack.c.bf16 %v505, %v504
  %v514 = vpack.c.bf16 %v507, %v506
  %v515 = vpack.c.bf16 %v509, %v508
  %vm516 = vcmask 261120
  %v518 = vsel %vm516, %v510, %v71
  %v520 = vsel %vm516, %v511, %v72
  %v522 = vsel %vm516, %v512, %v73
  %v524 = vsel %vm516, %v513, %v74
  %v526 = vsel %vm516, %v514, %v75
  %v528 = vsel %vm516, %v515, %v76
  %529 = vrot.lane.b32.xlu0 %v93, 64
  %v530 = vpop.permute.xlu0 %529
  %531 = vrot.lane.b32.xlu0 %v94, 64
  %v532 = vpop.permute.xlu0 %531
  %533 = vrot.lane.b32.xlu0 %v95, 64
  %v534 = vpop.permute.xlu0 %533
  %535 = vrot.lane.b32.xlu0 %v96, 64
  %v536 = vpop.permute.xlu0 %535
  %541 = vrot.lane.b32.xlu0 %v35, 64
  %v542 = vpop.permute.xlu0 %541
  %543 = vrot.lane.b32.xlu0 %v36, 64
  %v544 = vpop.permute.xlu0 %543
  %545 = vrot.lane.b32.xlu0 %v37, 64
  %v546 = vpop.permute.xlu0 %545
  %547 = vrot.lane.b32.xlu0 %v38, 64
  %v548 = vpop.permute.xlu0 %547
  %549 = vrot.lane.b32.xlu0 %v39, 64
  %v550 = vpop.permute.xlu0 %549
  %551 = vrot.lane.b32.xlu0 %v40, 64
  %v552 = vpop.permute.xlu0 %551
  %553 = vrot.lane.b32.xlu0 %v41, 64
  %v554 = vpop.permute.xlu0 %553
  %555 = vrot.lane.b32.xlu0 %v42, 64
  %v556 = vpop.permute.xlu0 %555
  %557 = vrot.lane.b32.xlu0 %v43, 64
  %v558 = vpop.permute.xlu0 %557
  %559 = vrot.lane.b32.xlu0 %v44, 64
  %v560 = vpop.permute.xlu0 %559
  %561 = vrot.lane.b32.xlu0 %v45, 64
  %v562 = vpop.permute.xlu0 %561
  %563 = vrot.lane.b32.xlu0 %v46, 64
  %v564 = vpop.permute.xlu0 %563
  %v577 = vsel %vm101, %v518, 0
  %v579 = vsel %vm101, %v520, 0
  %v581 = vsel %vm101, %v522, 0
  %v583 = vsel %vm101, %v524, 0
  %v585 = vsel %vm101, %v526, 0
  %v587 = vsel %vm101, %v528, 0
  %589 = vmatprep.subr.bf16.mxu0 0
  %590 = vmatpush1.bf16.msra.mxu0 0
  %591 = vmatprep.subr.bf16.mxu0 0
  %592 = vmatpush1.bf16.msra.mxu0 0
  %593 = vmatprep.subr.bf16.mxu0 0
  %594 = vmatpush1.bf16.msra.mxu0 0
  %595 = vmatprep.subr.bf16.mxu0 0
  %596 = vmatpush1.bf16.msra.mxu0 0
  %597 = vmatprep.subr.bf16.mxu0 0
  %598 = vmatpush1.bf16.msra.mxu0 %v536
  %599 = vmatprep.subr.bf16.mxu0 0
  %600 = vmatpush1.bf16.msra.mxu0 %v534
  %601 = vmatprep.subr.bf16.mxu0 0
  %602 = vmatpush1.bf16.msra.mxu0 %v532
  %603 = vmatprep.subr.bf16.mxu0 0
  %604 = vmatpush1.bf16.msra.mxu0 %v530
  %605 = vmatprep.subr.bf16.mxu0 0
  %606 = vmatpush2.bf16.msra.mxu0 0
  %607 = vmatprep.subr.bf16.mxu0 0
  %608 = vmatpush2.bf16.msra.mxu0 0
  %609 = vmatprep.subr.bf16.mxu0 0
  %610 = vmatpush2.bf16.msra.mxu0 0
  %611 = vmatprep.subr.bf16.mxu0 0
  %612 = vmatpush2.bf16.msra.mxu0 0
  %613 = vmatprep.subr.bf16.mxu0 0
  %614 = vmatpush2.bf16.msra.mxu0 0
  %615 = vmatprep.subr.bf16.mxu0 0
  %616 = vmatpush2.bf16.msra.mxu0 0
  %617 = vmatprep.subr.bf16.mxu0 0
  %618 = vmatpush2.bf16.msra.mxu0 0
  %619 = vmatprep.subr.bf16.mxu0 0
  %620 = vmatpush2.bf16.msra.mxu0 0
  %621 = vmatprep.mubr.bf16.mxu0 0
  %622 = vmatmul.mubr.bf16.gmra.mxu0 %v577
  %v623 = vpop.f32.mrf.mxu0
  %v624 = vadd.f32 %v542, %v623
  %v625 = vpop.f32.mrf.mxu0
  %v626 = vpop.f32.mrf.mxu0
  %v627 = vadd.f32 %v544, %v626
  %v628 = vpop.f32.mrf.mxu0
  %629 = vmatprep.mubr.bf16.mxu0 0
  %630 = vmatmul.mubr.bf16.gmra.mxu0 %v579
  %v631 = vpop.f32.mrf.mxu0
  %v632 = vadd.f32 %v546, %v631
  %v633 = vpop.f32.mrf.mxu0
  %v634 = vpop.f32.mrf.mxu0
  %v635 = vadd.f32 %v548, %v634
  %v636 = vpop.f32.mrf.mxu0
  %637 = vmatprep.mubr.bf16.mxu0 0
  %638 = vmatmul.mubr.bf16.gmra.mxu0 %v581
  %v639 = vpop.f32.mrf.mxu0
  %v640 = vadd.f32 %v550, %v639
  %v641 = vpop.f32.mrf.mxu0
  %v642 = vpop.f32.mrf.mxu0
  %v643 = vadd.f32 %v552, %v642
  %v644 = vpop.f32.mrf.mxu0
  %645 = vmatprep.mubr.bf16.mxu0 0
  %646 = vmatmul.mubr.bf16.gmra.mxu0 %v583
  %v647 = vpop.f32.mrf.mxu0
  %v648 = vadd.f32 %v554, %v647
  %v649 = vpop.f32.mrf.mxu0
  %v650 = vpop.f32.mrf.mxu0
  %v651 = vadd.f32 %v556, %v650
  %v652 = vpop.f32.mrf.mxu0
  %653 = vmatprep.mubr.bf16.mxu0 0
  %654 = vmatmul.mubr.bf16.gmra.mxu0 %v585
  %v655 = vpop.f32.mrf.mxu0
  %v656 = vadd.f32 %v558, %v655
  %v657 = vpop.f32.mrf.mxu0
  %v658 = vpop.f32.mrf.mxu0
  %v659 = vadd.f32 %v560, %v658
  %v660 = vpop.f32.mrf.mxu0
  %661 = vmatprep.mubr.bf16.mxu0 0
  %662 = vmatmul.mubr.bf16.gmra.mxu0 %v587
  %v663 = vpop.f32.mrf.mxu0
  %v664 = vadd.f32 %v562, %v663
  %v665 = vpop.f32.mrf.mxu0
  %v666 = vpop.f32.mrf.mxu0
  %v667 = vadd.f32 %v564, %v666
  %v668 = vpop.f32.mrf.mxu0
  %669 = vdwg.mxu0
  %v670 = vtanh.pop %v624
  %v671 = vtanh.pop %v627
  %v672 = vtanh.pop %v632
  %v673 = vtanh.pop %v635
  %v674 = vtanh.pop %v640
  %v675 = vtanh.pop %v643
  %v676 = vtanh.pop %v648
  %v677 = vtanh.pop %v651
  %v678 = vtanh.pop %v656
  %v679 = vtanh.pop %v659
  %v680 = vtanh.pop %v664
  %v681 = vtanh.pop %v667
  %v682 = vmul.f32 %v463, %v670
  %v683 = vmul.f32 %v465, %v671
  %v684 = vmul.f32 %v467, %v672
  %v685 = vmul.f32 %v469, %v673
  %v686 = vmul.f32 %v471, %v674
  %v687 = vmul.f32 %v473, %v675
  %v688 = vmul.f32 %v475, %v676
  %v689 = vmul.f32 %v477, %v677
  %v690 = vmul.f32 %v479, %v678
  %v691 = vmul.f32 %v481, %v679
  %v692 = vmul.f32 %v483, %v680
  %v693 = vmul.f32 %v485, %v681
  %697 = vrot.lane.b32.xlu0 %v685, 32
  %v698 = vpop.permute.xlu0 %697
  %699 = vrot.lane.b32.xlu0 %v686, 32
  %v700 = vpop.permute.xlu0 %699
  %701 = vrot.lane.b32.xlu0 %v687, 32
  %v702 = vpop.permute.xlu0 %701
  %709 = vrot.lane.b32.xlu0 %v688, 64
  %v710 = vpop.permute.xlu0 %709
  %711 = vrot.lane.b32.xlu0 %v689, 64
  %v712 = vpop.permute.xlu0 %711
  %713 = vrot.lane.b32.xlu0 %v690, 64
  %v714 = vpop.permute.xlu0 %713
  %721 = vrot.lane.b32.xlu0 %v691, 96
  %v722 = vpop.permute.xlu0 %721
  %723 = vrot.lane.b32.xlu0 %v692, 96
  %v724 = vpop.permute.xlu0 %723
  %725 = vrot.lane.b32.xlu0 %v693, 96
  %v726 = vpop.permute.xlu0 %725
  %v730 = vsel %vm516, %v682, %v698
  %v731 = vsel %vm516, %v683, %v700
  %v732 = vsel %vm516, %v684, %v702
  %v733 = vsel %vm101, %v730, %v710
  %v734 = vsel %vm101, %v731, %v712
  %v735 = vsel %vm101, %v732, %v714
  %vm736 = vcmask 785408
  %v737 = vsel %vm736, %v733, %v722
  %v738 = vsel %vm736, %v734, %v724
  %v739 = vsel %vm736, %v735, %v726
  %740 = vst [vmem:[%s3] sm:$0xff] %v737
  %741 = vst [vmem:[%s3 + $0x8] sm:$0xff] %v738
  %742 = vst [vmem:[%s3 + $0x10] sm:$0xff] %v739
  // Predicated region
  $region14: #{bipn_forward.3} parent=0 // pred_check
    _
  $region15: #{bipn_forward.3} parent=0 // pred_check_branch
    %744 = sbr.rel (0) target = $region17
  $region16: #{bipn_forward.3} parent=0 // pred_region
    _
  $region17: #{bipn_forward.3} parent=0 // pred_fallthru
    _
  // Predicated region
  $region18: #{bipn_forward.3} parent=0 // pred_check
    _
  $region19: #{bipn_forward.3} parent=0 // pred_check_branch
    %746 = sbr.rel (0) target = $region21
  $region20: #{bipn_forward.3} parent=0 // pred_region
    _
  $region21: #{bipn_forward.3} parent=0 // pred_fallthru
    _

</llo_original>
